<compile_context>
chip_gen: v7x
topology: tpu7x:2x2x1
jax: 0.10.0
libtpu: 0.0.40
codegen_flags: <defaults>
</compile_context>

<pallas_src>
import functools

import jax
import jax.numpy as jnp
from jax.experimental import pallas as pl
from jax.experimental.pallas import tpu as pltpu


# ----------------------------- Pallas kernel -------------------------------

def _round_up(x, m):
    return ((x + m - 1) // m) * m


def _mm_bn_kernel(*refs, relu, has_residual):
    """Tiled matmul with fused BN (scale/shift), residual add and ReLU."""
    if has_residual:
        x_ref, w_ref, s_ref, b_ref, r_ref, o_ref, acc_ref = refs
    else:
        x_ref, w_ref, s_ref, b_ref, o_ref, acc_ref = refs
        r_ref = None

    k = pl.program_id(2)

    @pl.when(k == 0)
    def _():
        acc_ref[...] = jnp.zeros_like(acc_ref)

    acc_ref[...] += jnp.dot(x_ref[...], w_ref[...],
                            preferred_element_type=jnp.float32)

    @pl.when(k == pl.num_programs(2) - 1)
    def _():
        y = acc_ref[...] * s_ref[...] + b_ref[...]   # folded BatchNorm
        if has_residual:
            y = y + r_ref[...]                        # fused residual add
        if relu:
            y = jnp.maximum(y, 0.0)
        o_ref[...] = y.astype(o_ref.dtype)


def matmul_bn_act(x, w, scale, shift, residual=None, relu=True,
                  tm_max=256, tn_max=256, tk_max=512):
    """out = act((x @ w) * scale + shift [+ residual]).

    x: (M, K) f32, w: (K, N) f32, scale/shift: (N,) f32,
    residual: optional (M, N) f32.
    """
    M, K = x.shape
    K2, N = w.shape
    assert K == K2

    tm = min(tm_max, _round_up(M, 8))
    tn = min(tn_max, _round_up(N, 128))
    tk = min(tk_max, _round_up(K, 128))
    Mp, Kp, Np = _round_up(M, tm), _round_up(K, tk), _round_up(N, tn)

    if (Mp, Kp) != (M, K):
        x = jnp.pad(x, ((0, Mp - M), (0, Kp - K)))
    if (Kp, Np) != (K, N):
        w = jnp.pad(w, ((0, Kp - K), (0, Np - N)))
    scale = jnp.pad(scale, (0, Np - N)).reshape(1, Np)
    shift = jnp.pad(shift, (0, Np - N)).reshape(1, Np)

    in_specs = [
        pl.BlockSpec((tm, tk), lambda i, j, k: (i, k)),
        pl.BlockSpec((tk, tn), lambda i, j, k: (k, j)),
        pl.BlockSpec((1, tn), lambda i, j, k: (0, j)),
        pl.BlockSpec((1, tn), lambda i, j, k: (0, j)),
    ]
    args = [x, w, scale, shift]

    has_residual = residual is not None
    if has_residual:
        r = residual
        if r.shape != (Mp, Np):
            r = jnp.pad(r, ((0, Mp - M), (0, Np - N)))
        in_specs.append(pl.BlockSpec((tm, tn), lambda i, j, k: (i, j)))
        args.append(r)

    out = pl.pallas_call(
        functools.partial(_mm_bn_kernel, relu=relu, has_residual=has_residual),
        out_shape=jax.ShapeDtypeStruct((Mp, Np), jnp.float32),
        grid_spec=pltpu.PrefetchScalarGridSpec(
            num_scalar_prefetch=0,
            grid=(Mp // tm, Np // tn, Kp // tk),
            in_specs=in_specs,
            out_specs=pl.BlockSpec((tm, tn), lambda i, j, k: (i, j)),
            scratch_shapes=[pltpu.VMEM((tm, tn), jnp.float32)],
        ),
        compiler_params=pltpu.CompilerParams(
            dimension_semantics=("parallel", "parallel", "arbitrary")),
    )(*args)

    if (Mp, Np) != (M, N):
        out = out[:M, :N]
    return out


# ------------------------------- glue ---------------------------------------

def _bn_fold(gamma, beta, mean, var, eps=1e-5):
    """Eval-mode BatchNorm as per-channel scale/shift."""
    scale = gamma * jax.lax.rsqrt(var + eps)
    shift = beta - mean * scale
    return scale, shift


def _im2col_3x3(x_nhwc, stride):
    """3x3, pad 1, given stride. Returns ((N*Ho*Wo, 9*C), Ho, Wo)."""
    N, H, W, C = x_nhwc.shape
    Ho = (H - 1) // stride + 1
    Wo = (W - 1) // stride + 1
    xp = jnp.pad(x_nhwc, ((0, 0), (1, 1), (1, 1), (0, 0)))
    cols = []
    for kh in range(3):
        for kw in range(3):
            cols.append(xp[:, kh:kh + stride * (Ho - 1) + 1:stride,
                           kw:kw + stride * (Wo - 1) + 1:stride, :])
    pat = jnp.stack(cols, axis=3).reshape(N * Ho * Wo, 9 * C)
    return pat, Ho, Wo


def _w3x3_to_mat(w_oihw):
    """(Cout, Cin, 3, 3) -> (9*Cin, Cout), matching [kh, kw, cin] patches."""
    cout, cin = w_oihw.shape[:2]
    return jnp.transpose(w_oihw, (2, 3, 1, 0)).reshape(9 * cin, cout)


# ----------------------------- BasicBlock -----------------------------------

def basic_block_forward(params, x_nchw, stride=1):
    x = jnp.transpose(x_nchw, (0, 2, 3, 1))            # NCHW -> NHWC
    N, H, W, Cin = x.shape
    Cout = params["conv1_w"].shape[0]

    s1, b1 = _bn_fold(params["bn1_gamma"], params["bn1_beta"],
                      params["bn1_mean"], params["bn1_var"])
    s2, b2 = _bn_fold(params["bn2_gamma"], params["bn2_beta"],
                      params["bn2_mean"], params["bn2_var"])

    # conv1 (3x3, stride, pad 1, no bias) + bn1 + relu
    pat1, Ho, Wo = _im2col_3x3(x, stride)
    h = matmul_bn_act(pat1, _w3x3_to_mat(params["conv1_w"]), s1, b1, relu=True)
    h = h.reshape(N, Ho, Wo, Cout)

    # skip path: identity or 1x1 conv (stride) + bn
    if stride != 1 or Cin != Cout:
        ss, bs = _bn_fold(params["bns_gamma"], params["bns_beta"],
                          params["bns_mean"], params["bns_var"])
        xs = x[:, ::stride, ::stride, :].reshape(N * Ho * Wo, Cin)
        ws = params["convs_w"].reshape(Cout, Cin).T
        skip = matmul_bn_act(xs, ws, ss, bs, relu=False)
    else:
        skip = x.reshape(N * Ho * Wo, Cin)

    # conv2 (3x3, stride 1, pad 1, no bias) + bn2 + residual add + relu (fused)
    pat2, _, _ = _im2col_3x3(h, 1)
    y = matmul_bn_act(pat2, _w3x3_to_mat(params["conv2_w"]), s2, b2,
                      residual=skip, relu=True)
    y = y.reshape(N, Ho, Wo, Cout)
    return jnp.transpose(y, (0, 3, 1, 2))               # NHWC -> NCHW


def init_params(key, in_ch, out_ch, stride=1):
    ks = jax.random.split(key, 16)
    # TODO(synk): BatchNorm uses supplied running statistics (eval-mode
    # semantics); training-mode batch statistics are not implemented.
    p = {
        "conv1_w": 0.1 * jax.random.normal(ks[0], (out_ch, in_ch, 3, 3),
                                           jnp.float32),
        "conv2_w": 0.1 * jax.random.normal(ks[1], (out_ch, out_ch, 3, 3),
                                           jnp.float32),
        "bn1_gamma": 1.0 + 0.1 * jax.random.normal(ks[2], (out_ch,), jnp.float32),
        "bn1_beta": 0.1 * jax.random.normal(ks[3], (out_ch,), jnp.float32),
        "bn1_mean": 0.1 * jax.random.normal(ks[4], (out_ch,), jnp.float32),
        "bn1_var": 0.5 + jnp.abs(jax.random.normal(ks[5], (out_ch,), jnp.float32)),
        "bn2_gamma": 1.0 + 0.1 * jax.random.normal(ks[6], (out_ch,), jnp.float32),
        "bn2_beta": 0.1 * jax.random.normal(ks[7], (out_ch,), jnp.float32),
        "bn2_mean": 0.1 * jax.random.normal(ks[8], (out_ch,), jnp.float32),
        "bn2_var": 0.5 + jnp.abs(jax.random.normal(ks[9], (out_ch,), jnp.float32)),
    }
    if stride != 1 or in_ch != out_ch:
        p["convs_w"] = 0.1 * jax.random.normal(ks[10], (out_ch, in_ch, 1, 1),
                                               jnp.float32)
        p["bns_gamma"] = 1.0 + 0.1 * jax.random.normal(ks[11], (out_ch,),
                                                       jnp.float32)
        p["bns_beta"] = 0.1 * jax.random.normal(ks[12], (out_ch,), jnp.float32)
        p["bns_mean"] = 0.1 * jax.random.normal(ks[13], (out_ch,), jnp.float32)
        p["bns_var"] = 0.5 + jnp.abs(jax.random.normal(ks[14], (out_ch,),
                                                       jnp.float32))
    return p


if __name__ == "__main__":
    key = jax.random.PRNGKey(0)
    pkey, xkey = jax.random.split(key)

    in_ch, out_ch, stride = 4, 8, 2        # exercises the projection skip path
    params = init_params(pkey, in_ch, out_ch, stride)
    x = jax.random.normal(xkey, (2, in_ch, 16, 16), jnp.float32)

    fwd = jax.jit(functools.partial(basic_block_forward, stride=stride))
    out = fwd(params, x)
    jax.block_until_ready(out)

    assert out.shape == (2, out_ch, 8, 8), out.shape
    assert bool(jnp.all(jnp.isfinite(out)))
    assert bool(jnp.all(out >= 0.0))       # final ReLU
    print("KERNEL_OK")
</pallas_src>

<mosaic_0001>
module attributes {stable_mosaic.version = 11 : i64} {
  func.func @_mm_bn_kernel(%arg0: i32, %arg1: i32, %arg2: i32, %arg3: memref<128x128xf32, #tpu.memory_space<vmem>>, %arg4: memref<128x128xf32, #tpu.memory_space<vmem>>, %arg5: memref<1x128xf32, #tpu.memory_space<vmem>>, %arg6: memref<1x128xf32, #tpu.memory_space<vmem>>, %arg7: memref<128x128xf32, #tpu.memory_space<vmem>>, %arg8: memref<128x128xf32, #tpu.memory_space<vmem>>) attributes {dimension_semantics = [#tpu.dimension_semantics<parallel>, #tpu.dimension_semantics<parallel>, #tpu.dimension_semantics<arbitrary>], iteration_bounds = array<i64: 1, 1, 1>, scalar_prefetch = 0 : i64, scratch_operands = 1 : i64, tpu.core_type = #tpu.core_type<tc>, window_params = [{transform_indices = @transform_0, window_bounds = array<i64: 128, 128>}, {transform_indices = @transform_1, window_bounds = array<i64: 128, 128>}, {transform_indices = @transform_2, window_bounds = array<i64: 1, 128>}, {transform_indices = @transform_3, window_bounds = array<i64: 1, 128>}, {transform_indices = @transform_4, window_bounds = array<i64: 128, 128>}]} {
    %c0_i32 = arith.constant 0 : i32
    %0 = arith.cmpi eq, %arg2, %c0_i32 : i32
    %1 = arith.extui %0 : i1 to i32
    %c0_i32_0 = arith.constant 0 : i32
    %2 = arith.cmpi ne, %1, %c0_i32_0 : i32
    scf.if %2 {
      %cst_10 = arith.constant 0.000000e+00 : f32
      %12 = vector.broadcast %cst_10 : f32 to vector<128x128xf32>
      %c0_11 = arith.constant 0 : index
      %c0_12 = arith.constant 0 : index
      %13 = vector.load %arg8[%c0_11, %c0_12] : memref<128x128xf32, #tpu.memory_space<vmem>>, vector<128x128xf32>
      tpu.vector_store %arg8[%c0_11, %c0_12], %12 {strides = array<i32>} : memref<128x128xf32, #tpu.memory_space<vmem>>, vector<128x128xf32>,
    } else {
    }
    %c0 = arith.constant 0 : index
    %c0_1 = arith.constant 0 : index
    %3 = vector.load %arg8[%c0, %c0_1] : memref<128x128xf32, #tpu.memory_space<vmem>>, vector<128x128xf32>
    %c0_2 = arith.constant 0 : index
    %c0_3 = arith.constant 0 : index
    %4 = vector.load %arg3[%c0_2, %c0_3] : memref<128x128xf32, #tpu.memory_space<vmem>>, vector<128x128xf32>
    %c0_4 = arith.constant 0 : index
    %c0_5 = arith.constant 0 : index
    %5 = vector.load %arg4[%c0_4, %c0_5] : memref<128x128xf32, #tpu.memory_space<vmem>>, vector<128x128xf32>
    %cst = arith.constant dense<0.000000e+00> : vector<128x128xf32>
    %6 = tpu.matmul %4, %5, %cst {dimension_numbers = #tpu.dot_dimension_numbers<[1], [0], [0], [1], [0, 0, 1, 1], [], []>} : vector<128x128xf32>, vector<128x128xf32>, vector<128x128xf32> -> vector<128x128xf32>
    %7 = arith.addf %3, %6 : vector<128x128xf32>
    %c0_6 = arith.constant 0 : index
    %c0_7 = arith.constant 0 : index
    %8 = vector.load %arg8[%c0_6, %c0_7] : memref<128x128xf32, #tpu.memory_space<vmem>>, vector<128x128xf32>
    tpu.vector_store %arg8[%c0_6, %c0_7], %7 {strides = array<i32>} : memref<128x128xf32, #tpu.memory_space<vmem>>, vector<128x128xf32>,
    %c0_i32_8 = arith.constant 0 : i32
    %9 = arith.cmpi eq, %arg2, %c0_i32_8 : i32
    %10 = arith.extui %9 : i1 to i32
    %c0_i32_9 = arith.constant 0 : i32
    %11 = arith.cmpi ne, %10, %c0_i32_9 : i32
    scf.if %11 {
      %c0_10 = arith.constant 0 : index
      %c0_11 = arith.constant 0 : index
      %12 = vector.load %arg8[%c0_10, %c0_11] : memref<128x128xf32, #tpu.memory_space<vmem>>, vector<128x128xf32>
      %c0_12 = arith.constant 0 : index
      %c0_13 = arith.constant 0 : index
      %13 = vector.load %arg5[%c0_12, %c0_13] : memref<1x128xf32, #tpu.memory_space<vmem>>, vector<1x128xf32>
      %14 = vector.broadcast %13 : vector<1x128xf32> to vector<128x128xf32>
      %15 = arith.mulf %12, %14 : vector<128x128xf32>
      %c0_14 = arith.constant 0 : index
      %c0_15 = arith.constant 0 : index
      %16 = vector.load %arg6[%c0_14, %c0_15] : memref<1x128xf32, #tpu.memory_space<vmem>>, vector<1x128xf32>
      %17 = vector.broadcast %16 : vector<1x128xf32> to vector<128x128xf32>
      %18 = arith.addf %15, %17 : vector<128x128xf32>
      %cst_16 = arith.constant 0.000000e+00 : f32
      %19 = vector.broadcast %cst_16 : f32 to vector<128x128xf32>
      %20 = arith.maximumf %18, %19 : vector<128x128xf32>
      %c0_17 = arith.constant 0 : index
      %c0_18 = arith.constant 0 : index
      %21 = vector.load %arg7[%c0_17, %c0_18] : memref<128x128xf32, #tpu.memory_space<vmem>>, vector<128x128xf32>
      tpu.vector_store %arg7[%c0_17, %c0_18], %20 {strides = array<i32>} : memref<128x128xf32, #tpu.memory_space<vmem>>, vector<128x128xf32>,
    } else {
    }
    return
  }
  func.func @transform_0(%arg0: i32, %arg1: i32, %arg2: i32) -> (i32, i32) {
    %c0_i32 = arith.constant 0 : i32
    return %arg0, %arg2 : i32, i32
  }
  func.func @transform_1(%arg0: i32, %arg1: i32, %arg2: i32) -> (i32, i32) {
    %c0_i32 = arith.constant 0 : i32
    return %arg2, %arg1 : i32, i32
  }
  func.func @transform_2(%arg0: i32, %arg1: i32, %arg2: i32) -> (i32, i32) {
    %c0_i32 = arith.constant 0 : i32
    %c0_i32_0 = arith.constant 0 : i32
    return %c0_i32, %arg1 : i32, i32
  }
  func.func @transform_3(%arg0: i32, %arg1: i32, %arg2: i32) -> (i32, i32) {
    %c0_i32 = arith.constant 0 : i32
    %c0_i32_0 = arith.constant 0 : i32
    return %c0_i32, %arg1 : i32, i32
  }
  func.func @transform_4(%arg0: i32, %arg1: i32, %arg2: i32) -> (i32, i32) {
    %c0_i32 = arith.constant 0 : i32
    return %arg0, %arg1 : i32, i32
  }
}

module attributes {stable_mosaic.version = 11 : i64} {
  func.func @_mm_bn_kernel(%arg0: i32, %arg1: i32, %arg2: i32, %arg3: memref<128x128xf32, #tpu.memory_space<vmem>>, %arg4: memref<128x128xf32, #tpu.memory_space<vmem>>, %arg5: memref<1x128xf32, #tpu.memory_space<vmem>>, %arg6: memref<1x128xf32, #tpu.memory_space<vmem>>, %arg7: memref<128x128xf32, #tpu.memory_space<vmem>>, %arg8: memref<128x128xf32, #tpu.memory_space<vmem>>) attributes {dimension_semantics = [#tpu.dimension_semantics<parallel>, #tpu.dimension_semantics<parallel>, #tpu.dimension_semantics<arbitrary>], iteration_bounds = array<i64: 1, 1, 1>, scalar_prefetch = 0 : i64, scratch_operands = 1 : i64, tpu.core_type = #tpu.core_type<tc>, window_params = [{transform_indices = @transform_0, window_bounds = array<i64: 128, 128>}, {transform_indices = @transform_1, window_bounds = array<i64: 128, 128>}, {transform_indices = @transform_2, window_bounds = array<i64: 1, 128>}, {transform_indices = @transform_3, window_bounds = array<i64: 1, 128>}, {transform_indices = @transform_4, window_bounds = array<i64: 128, 128>}]} {
    %c0_i32 = arith.constant 0 : i32
    %0 = arith.cmpi eq, %arg2, %c0_i32 : i32
    %1 = arith.extui %0 : i1 to i32
    %c0_i32_0 = arith.constant 0 : i32
    %2 = arith.cmpi ne, %1, %c0_i32_0 : i32
    scf.if %2 {
      %cst_10 = arith.constant 0.000000e+00 : f32
      %12 = vector.broadcast %cst_10 : f32 to vector<128x128xf32>
      %c0_11 = arith.constant 0 : index
      %c0_12 = arith.constant 0 : index
      %13 = vector.load %arg8[%c0_11, %c0_12] : memref<128x128xf32, #tpu.memory_space<vmem>>, vector<128x128xf32>
      tpu.vector_store %arg8[%c0_11, %c0_12], %12 {strides = array<i32>} : memref<128x128xf32, #tpu.memory_space<vmem>>, vector<128x128xf32>,
    } else {
    }
    %c0 = arith.constant 0 : index
    %c0_1 = arith.constant 0 : index
    %3 = vector.load %arg8[%c0, %c0_1] : memref<128x128xf32, #tpu.memory_space<vmem>>, vector<128x128xf32>
    %c0_2 = arith.constant 0 : index
    %c0_3 = arith.constant 0 : index
    %4 = vector.load %arg3[%c0_2, %c0_3] : memref<128x128xf32, #tpu.memory_space<vmem>>, vector<128x128xf32>
    %c0_4 = arith.constant 0 : index
    %c0_5 = arith.constant 0 : index
    %5 = vector.load %arg4[%c0_4, %c0_5] : memref<128x128xf32, #tpu.memory_space<vmem>>, vector<128x128xf32>
    %cst = arith.constant dense<0.000000e+00> : vector<128x128xf32>
    %6 = tpu.matmul %4, %5, %cst {dimension_numbers = #tpu.dot_dimension_numbers<[1], [0], [0], [1], [0, 0, 1, 1], [], []>} : vector<128x128xf32>, vector<128x128xf32>, vector<128x128xf32> -> vector<128x128xf32>
    %7 = arith.addf %3, %6 : vector<128x128xf32>
    %c0_6 = arith.constant 0 : index
    %c0_7 = arith.constant 0 : index
    %8 = vector.load %arg8[%c0_6, %c0_7] : memref<128x128xf32, #tpu.memory_space<vmem>>, vector<128x128xf32>
    tpu.vector_store %arg8[%c0_6, %c0_7], %7 {strides = array<i32>} : memref<128x128xf32, #tpu.memory_space<vmem>>, vector<128x128xf32>,
    %c0_i32_8 = arith.constant 0 : i32
    %9 = arith.cmpi eq, %arg2, %c0_i32_8 : i32
    %10 = arith.extui %9 : i1 to i32
    %c0_i32_9 = arith.constant 0 : i32
    %11 = arith.cmpi ne, %10, %c0_i32_9 : i32
    scf.if %11 {
      %c0_10 = arith.constant 0 : index
      %c0_11 = arith.constant 0 : index
      %12 = vector.load %arg8[%c0_10, %c0_11] : memref<128x128xf32, #tpu.memory_space<vmem>>, vector<128x128xf32>
      %c0_12 = arith.constant 0 : index
      %c0_13 = arith.constant 0 : index
      %13 = vector.load %arg5[%c0_12, %c0_13] : memref<1x128xf32, #tpu.memory_space<vmem>>, vector<1x128xf32>
      %14 = vector.broadcast %13 : vector<1x128xf32> to vector<128x128xf32>
      %15 = arith.mulf %12, %14 : vector<128x128xf32>
      %c0_14 = arith.constant 0 : index
      %c0_15 = arith.constant 0 : index
      %16 = vector.load %arg6[%c0_14, %c0_15] : memref<1x128xf32, #tpu.memory_space<vmem>>, vector<1x128xf32>
      %17 = vector.broadcast %16 : vector<1x128xf32> to vector<128x128xf32>
      %18 = arith.addf %15, %17 : vector<128x128xf32>
      %c0_16 = arith.constant 0 : index
      %c0_17 = arith.constant 0 : index
      %19 = vector.load %arg7[%c0_16, %c0_17] : memref<128x128xf32, #tpu.memory_space<vmem>>, vector<128x128xf32>
      tpu.vector_store %arg7[%c0_16, %c0_17], %18 {strides = array<i32>} : memref<128x128xf32, #tpu.memory_space<vmem>>, vector<128x128xf32>,
    } else {
    }
    return
  }
  func.func @transform_0(%arg0: i32, %arg1: i32, %arg2: i32) -> (i32, i32) {
    %c0_i32 = arith.constant 0 : i32
    return %arg0, %arg2 : i32, i32
  }
  func.func @transform_1(%arg0: i32, %arg1: i32, %arg2: i32) -> (i32, i32) {
    %c0_i32 = arith.constant 0 : i32
    return %arg2, %arg1 : i32, i32
  }
  func.func @transform_2(%arg0: i32, %arg1: i32, %arg2: i32) -> (i32, i32) {
    %c0_i32 = arith.constant 0 : i32
    %c0_i32_0 = arith.constant 0 : i32
    return %c0_i32, %arg1 : i32, i32
  }
  func.func @transform_3(%arg0: i32, %arg1: i32, %arg2: i32) -> (i32, i32) {
    %c0_i32 = arith.constant 0 : i32
    %c0_i32_0 = arith.constant 0 : i32
    return %c0_i32, %arg1 : i32, i32
  }
  func.func @transform_4(%arg0: i32, %arg1: i32, %arg2: i32) -> (i32, i32) {
    %c0_i32 = arith.constant 0 : i32
    return %arg0, %arg1 : i32, i32
  }
}

module attributes {stable_mosaic.version = 11 : i64} {
  func.func @_mm_bn_kernel(%arg0: i32, %arg1: i32, %arg2: i32, %arg3: memref<128x128xf32, #tpu.memory_space<vmem>>, %arg4: memref<128x128xf32, #tpu.memory_space<vmem>>, %arg5: memref<1x128xf32, #tpu.memory_space<vmem>>, %arg6: memref<1x128xf32, #tpu.memory_space<vmem>>, %arg7: memref<128x128xf32, #tpu.memory_space<vmem>>, %arg8: memref<128x128xf32, #tpu.memory_space<vmem>>, %arg9: memref<128x128xf32, #tpu.memory_space<vmem>>) attributes {dimension_semantics = [#tpu.dimension_semantics<parallel>, #tpu.dimension_semantics<parallel>, #tpu.dimension_semantics<arbitrary>], iteration_bounds = array<i64: 1, 1, 1>, scalar_prefetch = 0 : i64, scratch_operands = 1 : i64, tpu.core_type = #tpu.core_type<tc>, window_params = [{transform_indices = @transform_0, window_bounds = array<i64: 128, 128>}, {transform_indices = @transform_1, window_bounds = array<i64: 128, 128>}, {transform_indices = @transform_2, window_bounds = array<i64: 1, 128>}, {transform_indices = @transform_3, window_bounds = array<i64: 1, 128>}, {transform_indices = @transform_4, window_bounds = array<i64: 128, 128>}, {transform_indices = @transform_5, window_bounds = array<i64: 128, 128>}]} {
    %c0_i32 = arith.constant 0 : i32
    %0 = arith.cmpi eq, %arg2, %c0_i32 : i32
    %1 = arith.extui %0 : i1 to i32
    %c0_i32_0 = arith.constant 0 : i32
    %2 = arith.cmpi ne, %1, %c0_i32_0 : i32
    scf.if %2 {
      %cst_10 = arith.constant 0.000000e+00 : f32
      %12 = vector.broadcast %cst_10 : f32 to vector<128x128xf32>
      %c0_11 = arith.constant 0 : index
      %c0_12 = arith.constant 0 : index
      %13 = vector.load %arg9[%c0_11, %c0_12] : memref<128x128xf32, #tpu.memory_space<vmem>>, vector<128x128xf32>
      tpu.vector_store %arg9[%c0_11, %c0_12], %12 {strides = array<i32>} : memref<128x128xf32, #tpu.memory_space<vmem>>, vector<128x128xf32>,
    } else {
    }
    %c0 = arith.constant 0 : index
    %c0_1 = arith.constant 0 : index
    %3 = vector.load %arg9[%c0, %c0_1] : memref<128x128xf32, #tpu.memory_space<vmem>>, vector<128x128xf32>
    %c0_2 = arith.constant 0 : index
    %c0_3 = arith.constant 0 : index
    %4 = vector.load %arg3[%c0_2, %c0_3] : memref<128x128xf32, #tpu.memory_space<vmem>>, vector<128x128xf32>
    %c0_4 = arith.constant 0 : index
    %c0_5 = arith.constant 0 : index
    %5 = vector.load %arg4[%c0_4, %c0_5] : memref<128x128xf32, #tpu.memory_space<vmem>>, vector<128x128xf32>
    %cst = arith.constant dense<0.000000e+00> : vector<128x128xf32>
    %6 = tpu.matmul %4, %5, %cst {dimension_numbers = #tpu.dot_dimension_numbers<[1], [0], [0], [1], [0, 0, 1, 1], [], []>} : vector<128x128xf32>, vector<128x128xf32>, vector<128x128xf32> -> vector<128x128xf32>
    %7 = arith.addf %3, %6 : vector<128x128xf32>
    %c0_6 = arith.constant 0 : index
    %c0_7 = arith.constant 0 : index
    %8 = vector.load %arg9[%c0_6, %c0_7] : memref<128x128xf32, #tpu.memory_space<vmem>>, vector<128x128xf32>
    tpu.vector_store %arg9[%c0_6, %c0_7], %7 {strides = array<i32>} : memref<128x128xf32, #tpu.memory_space<vmem>>, vector<128x128xf32>,
    %c0_i32_8 = arith.constant 0 : i32
    %9 = arith.cmpi eq, %arg2, %c0_i32_8 : i32
    %10 = arith.extui %9 : i1 to i32
    %c0_i32_9 = arith.constant 0 : i32
    %11 = arith.cmpi ne, %10, %c0_i32_9 : i32
    scf.if %11 {
      %c0_10 = arith.constant 0 : index
      %c0_11 = arith.constant 0 : index
      %12 = vector.load %arg9[%c0_10, %c0_11] : memref<128x128xf32, #tpu.memory_space<vmem>>, vector<128x128xf32>
      %c0_12 = arith.constant 0 : index
      %c0_13 = arith.constant 0 : index
      %13 = vector.load %arg5[%c0_12, %c0_13] : memref<1x128xf32, #tpu.memory_space<vmem>>, vector<1x128xf32>
      %14 = vector.broadcast %13 : vector<1x128xf32> to vector<128x128xf32>
      %15 = arith.mulf %12, %14 : vector<128x128xf32>
      %c0_14 = arith.constant 0 : index
      %c0_15 = arith.constant 0 : index
      %16 = vector.load %arg6[%c0_14, %c0_15] : memref<1x128xf32, #tpu.memory_space<vmem>>, vector<1x128xf32>
      %17 = vector.broadcast %16 : vector<1x128xf32> to vector<128x128xf32>
      %18 = arith.addf %15, %17 : vector<128x128xf32>
      %c0_16 = arith.constant 0 : index
      %c0_17 = arith.constant 0 : index
      %19 = vector.load %arg7[%c0_16, %c0_17] : memref<128x128xf32, #tpu.memory_space<vmem>>, vector<128x128xf32>
      %20 = arith.addf %18, %19 : vector<128x128xf32>
      %cst_18 = arith.constant 0.000000e+00 : f32
      %21 = vector.broadcast %cst_18 : f32 to vector<128x128xf32>
      %22 = arith.maximumf %20, %21 : vector<128x128xf32>
      %c0_19 = arith.constant 0 : index
      %c0_20 = arith.constant 0 : index
      %23 = vector.load %arg8[%c0_19, %c0_20] : memref<128x128xf32, #tpu.memory_space<vmem>>, vector<128x128xf32>
      tpu.vector_store %arg8[%c0_19, %c0_20], %22 {strides = array<i32>} : memref<128x128xf32, #tpu.memory_space<vmem>>, vector<128x128xf32>,
    } else {
    }
    return
  }
  func.func @transform_0(%arg0: i32, %arg1: i32, %arg2: i32) -> (i32, i32) {
    %c0_i32 = arith.constant 0 : i32
    return %arg0, %arg2 : i32, i32
  }
  func.func @transform_1(%arg0: i32, %arg1: i32, %arg2: i32) -> (i32, i32) {
    %c0_i32 = arith.constant 0 : i32
    return %arg2, %arg1 : i32, i32
  }
  func.func @transform_2(%arg0: i32, %arg1: i32, %arg2: i32) -> (i32, i32) {
    %c0_i32 = arith.constant 0 : i32
    %c0_i32_0 = arith.constant 0 : i32
    return %c0_i32, %arg1 : i32, i32
  }
  func.func @transform_3(%arg0: i32, %arg1: i32, %arg2: i32) -> (i32, i32) {
    %c0_i32 = arith.constant 0 : i32
    %c0_i32_0 = arith.constant 0 : i32
    return %c0_i32, %arg1 : i32, i32
  }
  func.func @transform_4(%arg0: i32, %arg1: i32, %arg2: i32) -> (i32, i32) {
    %c0_i32 = arith.constant 0 : i32
    return %arg0, %arg1 : i32, i32
  }
  func.func @transform_5(%arg0: i32, %arg1: i32, %arg2: i32) -> (i32, i32) {
    %c0_i32 = arith.constant 0 : i32
    return %arg0, %arg1 : i32, i32
  }
}

</mosaic_0001>

<llo_original>
// kernel: basic_block_forward.3
$region0: #{basic_block_forward.3}
  #allocation0 [shape = 'u32[]', space=smem, size = 0x4, offset = 0x4, fixed_abs, tag = 'smem constant byte address 0x4 - core index']
  #allocation1 [shape = 'u32[144,128]{1,0:T(1,128)}', space=vmem, size = 0x12000, scoped, tag = 'internal scratch']
  #allocation2 [shape = 'f32[128,128]{1,0:T(8,128)}', space=vmem, size = 0x10000, scoped, tag = 'scratch operand']
  %s0 = inlined_call_operand.vmem [shape: f32[128,128], index: 0, kind: input, shape index: {}]
  %s1 = inlined_call_operand.vmem [shape: f32[128,128], index: 1, kind: input, shape index: {}]
  %s2 = inlined_call_operand.vmem [shape: f32[1,128], index: 2, kind: input, shape index: {}]
  %s3 = inlined_call_operand.vmem [shape: f32[1,128], index: 3, kind: input, shape index: {}]
  %s4 = inlined_call_operand.vmem [shape: f32[128,128], index: 4, kind: output, shape index: {}]
  %s5 = sld [smem:[#allocation0]]
  $region34: #{basic_block_forward.3} parent=0
    _
  %s7 = ssub.s32 1, %s5
  %s8 = scalar_select 0, %s7, %s5
  // Predicated region
  $region2: #{basic_block_forward.3} parent=0 // pred_check
    _
  $region3: #{basic_block_forward.3} parent=0 // pred_check_branch
    %10 = sbr.rel (0) target = $region5
  $region4: #{basic_block_forward.3} parent=0 // pred_region
    _
  $region5: #{basic_block_forward.3} parent=0 // pred_fallthru
    _
  // Predicated region
  $region6: #{basic_block_forward.3} parent=0 // pred_check
    _
  $region7: #{basic_block_forward.3} parent=0 // pred_check_branch
    %12 = sbr.rel (0) target = $region9
  $region8: #{basic_block_forward.3} parent=0 // pred_region
    _
  $region9: #{basic_block_forward.3} parent=0 // pred_fallthru
    _
  // Predicated region
  $region10: #{basic_block_forward.3} parent=0 // pred_check
    _
  $region11: #{basic_block_forward.3} parent=0 // pred_check_branch
    %14 = sbr.rel (0) target = $region13
  $region12: #{basic_block_forward.3} parent=0 // pred_region
    _
  $region13: #{basic_block_forward.3} parent=0 // pred_fallthru
    _
  // Predicated region
  $region14: #{basic_block_forward.3} parent=0 // pred_check
    _
  $region15: #{basic_block_forward.3} parent=0 // pred_check_branch
    %16 = sbr.rel (0) target = $region17
  $region16: #{basic_block_forward.3} parent=0 // pred_region
    _
  $region17: #{basic_block_forward.3} parent=0 // pred_fallthru
    _
  %p17 = scmp.eq.s32.totalorder 0, 0
  // Predicated region
  $region18: #{basic_block_forward.3} parent=0 // pred_check
    %p18 = pneg %p17
  $region19: #{basic_block_forward.3} parent=0 // pred_check_branch
    %20 = sbr.rel (%p18) target = $region21
  $region20: #{basic_block_forward.3} parent=0 // pred_region
    %21 = vst [vmem:[#allocation2] sm:$0xff] 0.0
    %22 = vst [vmem:[#allocation2 + $0x8] sm:$0xff] 0.0
    %23 = vst [vmem:[#allocation2 + $0x10] sm:$0xff] 0.0
    %24 = vst [vmem:[#allocation2 + $0x18] sm:$0xff] 0.0
    %25 = vst [vmem:[#allocation2 + $0x20] sm:$0xff] 0.0
    %26 = vst [vmem:[#allocation2 + $0x28] sm:$0xff] 0.0
    %27 = vst [vmem:[#allocation2 + $0x30] sm:$0xff] 0.0
    %28 = vst [vmem:[#allocation2 + $0x38] sm:$0xff] 0.0
    %29 = vst [vmem:[#allocation2 + $0x40] sm:$0xff] 0.0
    %30 = vst [vmem:[#allocation2 + $0x48] sm:$0xff] 0.0
    %31 = vst [vmem:[#allocation2 + $0x50] sm:$0xff] 0.0
    %32 = vst [vmem:[#allocation2 + $0x58] sm:$0xff] 0.0
    %33 = vst [vmem:[#allocation2 + $0x60] sm:$0xff] 0.0
    %34 = vst [vmem:[#allocation2 + $0x68] sm:$0xff] 0.0
    %35 = vst [vmem:[#allocation2 + $0x70] sm:$0xff] 0.0
    %36 = vst [vmem:[#allocation2 + $0x78] sm:$0xff] 0.0
  $region21: #{basic_block_forward.3} parent=0 // pred_fallthru
    _
  %v37 = vld [vmem:[#allocation2] sm:$0xff]
  %v38 = vld [vmem:[#allocation2 + $0x8] sm:$0xff]
  %v39 = vld [vmem:[#allocation2 + $0x10] sm:$0xff]
  %v40 = vld [vmem:[#allocation2 + $0x18] sm:$0xff]
  %v41 = vld [vmem:[#allocation2 + $0x20] sm:$0xff]
  %v42 = vld [vmem:[#allocation2 + $0x28] sm:$0xff]
  %v43 = vld [vmem:[#allocation2 + $0x30] sm:$0xff]
  %v44 = vld [vmem:[#allocation2 + $0x38] sm:$0xff]
  %v45 = vld [vmem:[#allocation2 + $0x40] sm:$0xff]
  %v46 = vld [vmem:[#allocation2 + $0x48] sm:$0xff]
  %v47 = vld [vmem:[#allocation2 + $0x50] sm:$0xff]
  %v48 = vld [vmem:[#allocation2 + $0x58] sm:$0xff]
  %v49 = vld [vmem:[#allocation2 + $0x60] sm:$0xff]
  %v50 = vld [vmem:[#allocation2 + $0x68] sm:$0xff]
  %v51 = vld [vmem:[#allocation2 + $0x70] sm:$0xff]
  %v52 = vld [vmem:[#allocation2 + $0x78] sm:$0xff]
  %v53 = vld [vmem:[%s0] sm:$0xff]
  %v54 = vld [vmem:[%s0 + $0x8] sm:$0xff]
  %v55 = vld [vmem:[%s0 + $0x10] sm:$0xff]
  %v56 = vld [vmem:[%s0 + $0x18] sm:$0xff]
  %v57 = vld [vmem:[%s0 + $0x20] sm:$0xff]
  %v58 = vld [vmem:[%s0 + $0x28] sm:$0xff]
  %v59 = vld [vmem:[%s0 + $0x30] sm:$0xff]
  %v60 = vld [vmem:[%s0 + $0x38] sm:$0xff]
  %v61 = vld [vmem:[%s0 + $0x40] sm:$0xff]
  %v62 = vld [vmem:[%s0 + $0x48] sm:$0xff]
  %v63 = vld [vmem:[%s0 + $0x50] sm:$0xff]
  %v64 = vld [vmem:[%s0 + $0x58] sm:$0xff]
  %v65 = vld [vmem:[%s0 + $0x60] sm:$0xff]
  %v66 = vld [vmem:[%s0 + $0x68] sm:$0xff]
  %v67 = vld [vmem:[%s0 + $0x70] sm:$0xff]
  %v68 = vld [vmem:[%s0 + $0x78] sm:$0xff]
  %v69 = vld [vmem:[%s1] sm:$0xff]
  %v70 = vld [vmem:[%s1 + $0x8] sm:$0xff]
  %v71 = vld [vmem:[%s1 + $0x10] sm:$0xff]
  %v72 = vld [vmem:[%s1 + $0x18] sm:$0xff]
  %v73 = vld [vmem:[%s1 + $0x20] sm:$0xff]
  %v74 = vld [vmem:[%s1 + $0x28] sm:$0xff]
  %v75 = vld [vmem:[%s1 + $0x30] sm:$0xff]
  %v76 = vld [vmem:[%s1 + $0x38] sm:$0xff]
  %v77 = vld [vmem:[%s1 + $0x40] sm:$0xff]
  %v78 = vld [vmem:[%s1 + $0x48] sm:$0xff]
  %v79 = vld [vmem:[%s1 + $0x50] sm:$0xff]
  %v80 = vld [vmem:[%s1 + $0x58] sm:$0xff]
  %v81 = vld [vmem:[%s1 + $0x60] sm:$0xff]
  %v82 = vld [vmem:[%s1 + $0x68] sm:$0xff]
  %v83 = vld [vmem:[%s1 + $0x70] sm:$0xff]
  %v84 = vld [vmem:[%s1 + $0x78] sm:$0xff]
  %85 = vmatprep.subr.mxu0 0.0
  %86 = vmatpush1.msra.mxu0 %v69
  %87 = vmatprep.subr.mxu0 0.0
  %88 = vmatpush1.msra.mxu0 %v70
  %89 = vmatprep.subr.mxu0 0.0
  %90 = vmatpush1.msra.mxu0 %v71
  %91 = vmatprep.subr.mxu0 0.0
  %92 = vmatpush1.msra.mxu0 %v72
  %93 = vmatprep.subr.mxu0 0.0
  %94 = vmatpush1.msra.mxu0 %v73
  %95 = vmatprep.subr.mxu0 0.0
  %96 = vmatpush1.msra.mxu0 %v74
  %97 = vmatprep.subr.mxu0 0.0
  %98 = vmatpush1.msra.mxu0 %v75
  %99 = vmatprep.subr.mxu0 0.0
  %100 = vmatpush1.msra.mxu0 %v76
  %101 = vmatprep.subr.mxu0 0.0
  %102 = vmatpush1.msra.mxu0 %v77
  %103 = vmatprep.subr.mxu0 0.0
  %104 = vmatpush1.msra.mxu0 %v78
  %105 = vmatprep.subr.mxu0 0.0
  %106 = vmatpush1.msra.mxu0 %v79
  %107 = vmatprep.subr.mxu0 0.0
  %108 = vmatpush1.msra.mxu0 %v80
  %109 = vmatprep.subr.mxu0 0.0
  %110 = vmatpush1.msra.mxu0 %v81
  %111 = vmatprep.subr.mxu0 0.0
  %112 = vmatpush1.msra.mxu0 %v82
  %113 = vmatprep.subr.mxu0 0.0
  %114 = vmatpush1.msra.mxu0 %v83
  %115 = vmatprep.subr.mxu0 0.0
  %116 = vmatpush1.msra.mxu0 %v84
  %117 = vmatprep.subr.mxu0 0.0
  %118 = vmatpush1.msra.mxu0 0.0
  %119 = vmatprep.subr.mxu0 0.0
  %120 = vmatpush1.msra.mxu0 0.0
  %121 = vmatprep.subr.mxu0 0.0
  %122 = vmatpush1.msra.mxu0 0.0
  %123 = vmatprep.subr.mxu0 0.0
  %124 = vmatpush1.msra.mxu0 0.0
  %125 = vmatprep.subr.mxu0 0.0
  %126 = vmatpush1.msra.mxu0 0.0
  %127 = vmatprep.subr.mxu0 0.0
  %128 = vmatpush1.msra.mxu0 0.0
  %129 = vmatprep.subr.mxu0 0.0
  %130 = vmatpush1.msra.mxu0 0.0
  %131 = vmatprep.subr.mxu0 0.0
  %132 = vmatpush1.msra.mxu0 0.0
  %133 = vmatprep.subr.mxu0 0.0
  %134 = vmatpush1.msra.mxu0 0.0
  %135 = vmatprep.subr.mxu0 0.0
  %136 = vmatpush1.msra.mxu0 0.0
  %137 = vmatprep.subr.mxu0 0.0
  %138 = vmatpush1.msra.mxu0 0.0
  %139 = vmatprep.subr.mxu0 0.0
  %140 = vmatpush1.msra.mxu0 0.0
  %141 = vmatprep.subr.mxu0 0.0
  %142 = vmatpush1.msra.mxu0 0.0
  %143 = vmatprep.subr.mxu0 0.0
  %144 = vmatpush1.msra.mxu0 0.0
  %145 = vmatprep.subr.mxu0 0.0
  %146 = vmatpush1.msra.mxu0 0.0
  %147 = vmatprep.subr.mxu0 0.0
  %148 = vmatpush1.msra.mxu0 0.0
  %149 = vmatprep.mubr.f32.mxu0 0.0
  %150 = vmatmul.mubr.f32.gmra.mrb[0].mxu0 %v53
  %v151 = vpop.f32.mrb[0].mxu0
  %v152 = vadd.f32 0.0, %v151
  %v153 = vpop.f32.mrb[0].mxu0
  %154 = vmatprep.mubr.f32.mxu0 0.0
  %155 = vmatmul.mubr.f32.gmra.mrb[0].mxu0 %v54
  %v156 = vpop.f32.mrb[0].mxu0
  %v157 = vadd.f32 0.0, %v156
  %v158 = vpop.f32.mrb[0].mxu0
  %159 = vmatprep.mubr.f32.mxu0 0.0
  %160 = vmatmul.mubr.f32.gmra.mrb[0].mxu0 %v55
  %v161 = vpop.f32.mrb[0].mxu0
  %v162 = vadd.f32 0.0, %v161
  %v163 = vpop.f32.mrb[0].mxu0
  %164 = vmatprep.mubr.f32.mxu0 0.0
  %165 = vmatmul.mubr.f32.gmra.mrb[0].mxu0 %v56
  %v166 = vpop.f32.mrb[0].mxu0
  %v167 = vadd.f32 0.0, %v166
  %v168 = vpop.f32.mrb[0].mxu0
  %169 = vmatprep.mubr.f32.mxu0 0.0
  %170 = vmatmul.mubr.f32.gmra.mrb[0].mxu0 %v57
  %v171 = vpop.f32.mrb[0].mxu0
  %v172 = vadd.f32 0.0, %v171
  %v173 = vpop.f32.mrb[0].mxu0
  %174 = vmatprep.mubr.f32.mxu0 0.0
  %175 = vmatmul.mubr.f32.gmra.mrb[0].mxu0 %v58
  %v176 = vpop.f32.mrb[0].mxu0
  %v177 = vadd.f32 0.0, %v176
  %v178 = vpop.f32.mrb[0].mxu0
  %179 = vmatprep.mubr.f32.mxu0 0.0
  %180 = vmatmul.mubr.f32.gmra.mrb[0].mxu0 %v59
  %v181 = vpop.f32.mrb[0].mxu0
  %v182 = vadd.f32 0.0, %v181
  %v183 = vpop.f32.mrb[0].mxu0
  %184 = vmatprep.mubr.f32.mxu0 0.0
  %185 = vmatmul.mubr.f32.gmra.mrb[0].mxu0 %v60
  %v186 = vpop.f32.mrb[0].mxu0
  %v187 = vadd.f32 0.0, %v186
  %v188 = vpop.f32.mrb[0].mxu0
  %189 = vmatprep.mubr.f32.mxu0 0.0
  %190 = vmatmul.mubr.f32.gmra.mrb[0].mxu0 %v61
  %v191 = vpop.f32.mrb[0].mxu0
  %v192 = vadd.f32 0.0, %v191
  %v193 = vpop.f32.mrb[0].mxu0
  %194 = vmatprep.mubr.f32.mxu0 0.0
  %195 = vmatmul.mubr.f32.gmra.mrb[0].mxu0 %v62
  %v196 = vpop.f32.mrb[0].mxu0
  %v197 = vadd.f32 0.0, %v196
  %v198 = vpop.f32.mrb[0].mxu0
  %199 = vmatprep.mubr.f32.mxu0 0.0
  %200 = vmatmul.mubr.f32.gmra.mrb[0].mxu0 %v63
  %v201 = vpop.f32.mrb[0].mxu0
  %v202 = vadd.f32 0.0, %v201
  %v203 = vpop.f32.mrb[0].mxu0
  %204 = vmatprep.mubr.f32.mxu0 0.0
  %205 = vmatmul.mubr.f32.gmra.mrb[0].mxu0 %v64
  %v206 = vpop.f32.mrb[0].mxu0
  %v207 = vadd.f32 0.0, %v206
  %v208 = vpop.f32.mrb[0].mxu0
  %209 = vmatprep.mubr.f32.mxu0 0.0
  %210 = vmatmul.mubr.f32.gmra.mrb[0].mxu0 %v65
  %v211 = vpop.f32.mrb[0].mxu0
  %v212 = vadd.f32 0.0, %v211
  %v213 = vpop.f32.mrb[0].mxu0
  %214 = vmatprep.mubr.f32.mxu0 0.0
  %215 = vmatmul.mubr.f32.gmra.mrb[0].mxu0 %v66
  %v216 = vpop.f32.mrb[0].mxu0
  %v217 = vadd.f32 0.0, %v216
  %v218 = vpop.f32.mrb[0].mxu0
  %219 = vmatprep.mubr.f32.mxu0 0.0
  %220 = vmatmul.mubr.f32.gmra.mrb[0].mxu0 %v67
  %v221 = vpop.f32.mrb[0].mxu0
  %v222 = vadd.f32 0.0, %v221
  %v223 = vpop.f32.mrb[0].mxu0
  %224 = vmatprep.mubr.f32.mxu0 0.0
  %225 = vmatmul.mubr.f32.gmra.mrb[0].mxu0 %v68
  %v226 = vpop.f32.mrb[0].mxu0
  %v227 = vadd.f32 0.0, %v226
  %v228 = vpop.f32.mrb[0].mxu0
  %229 = vdwg.mxu0
  %v230 = vadd.f32 %v37, %v152
  %v231 = vadd.f32 %v38, %v157
  %v232 = vadd.f32 %v39, %v162
  %v233 = vadd.f32 %v40, %v167
  %v234 = vadd.f32 %v41, %v172
  %v235 = vadd.f32 %v42, %v177
  %v236 = vadd.f32 %v43, %v182
  %v237 = vadd.f32 %v44, %v187
  %v238 = vadd.f32 %v45, %v192
  %v239 = vadd.f32 %v46, %v197
  %v240 = vadd.f32 %v47, %v202
  %v241 = vadd.f32 %v48, %v207
  %v242 = vadd.f32 %v49, %v212
  %v243 = vadd.f32 %v50, %v217
  %v244 = vadd.f32 %v51, %v222
  %v245 = vadd.f32 %v52, %v227
  %246 = vst [vmem:[#allocation2] sm:$0xff] %v230
  %247 = vst [vmem:[#allocation2 + $0x8] sm:$0xff] %v231
  %248 = vst [vmem:[#allocation2 + $0x10] sm:$0xff] %v232
  %249 = vst [vmem:[#allocation2 + $0x18] sm:$0xff] %v233
  %250 = vst [vmem:[#allocation2 + $0x20] sm:$0xff] %v234
  %251 = vst [vmem:[#allocation2 + $0x28] sm:$0xff] %v235
  %252 = vst [vmem:[#allocation2 + $0x30] sm:$0xff] %v236
  %253 = vst [vmem:[#allocation2 + $0x38] sm:$0xff] %v237
  %254 = vst [vmem:[#allocation2 + $0x40] sm:$0xff] %v238
  %255 = vst [vmem:[#allocation2 + $0x48] sm:$0xff] %v239
  %256 = vst [vmem:[#allocation2 + $0x50] sm:$0xff] %v240
  %257 = vst [vmem:[#allocation2 + $0x58] sm:$0xff] %v241
  %258 = vst [vmem:[#allocation2 + $0x60] sm:$0xff] %v242
  %259 = vst [vmem:[#allocation2 + $0x68] sm:$0xff] %v243
  %260 = vst [vmem:[#allocation2 + $0x70] sm:$0xff] %v244
  %261 = vst [vmem:[#allocation2 + $0x78] sm:$0xff] %v245
  // Predicated region
  $region22: #{basic_block_forward.3} parent=0 // pred_check
    %p262 = pneg %p17
  $region23: #{basic_block_forward.3} parent=0 // pred_check_branch
    %264 = sbr.rel (%p262) target = $region25
  $region24: #{basic_block_forward.3} parent=0 // pred_region
    %v265 = vld [vmem:[#allocation2] sm:$0xff]
    %v266 = vld [vmem:[#allocation2 + $0x8] sm:$0xff]
    %v267 = vld [vmem:[#allocation2 + $0x10] sm:$0xff]
    %v268 = vld [vmem:[#allocation2 + $0x18] sm:$0xff]
    %v269 = vld [vmem:[#allocation2 + $0x20] sm:$0xff]
    %v270 = vld [vmem:[#allocation2 + $0x28] sm:$0xff]
    %v271 = vld [vmem:[#allocation2 + $0x30] sm:$0xff]
    %v272 = vld [vmem:[#allocation2 + $0x38] sm:$0xff]
    %v273 = vld [vmem:[#allocation2 + $0x40] sm:$0xff]
    %v274 = vld [vmem:[#allocation2 + $0x48] sm:$0xff]
    %v275 = vld [vmem:[#allocation2 + $0x50] sm:$0xff]
    %v276 = vld [vmem:[#allocation2 + $0x58] sm:$0xff]
    %v277 = vld [vmem:[#allocation2 + $0x60] sm:$0xff]
    %v278 = vld [vmem:[#allocation2 + $0x68] sm:$0xff]
    %v279 = vld [vmem:[#allocation2 + $0x70] sm:$0xff]
    %v280 = vld [vmem:[#allocation2 + $0x78] sm:$0xff]
    %v281 = vld [vmem:[%s2] sm:$0x1]
    %v283 = vlaneseq
    %v284 = vshrl.u32 %v283, 7
    %v285 = vsub.s32 0, %v284
    %v286 = vrot.slane %v281, %v285
    %v288 = vmul.f32 %v265, %v286
    %v289 = vmul.f32 %v266, %v286
    %v290 = vmul.f32 %v267, %v286
    %v291 = vmul.f32 %v268, %v286
    %v292 = vmul.f32 %v269, %v286
    %v293 = vmul.f32 %v270, %v286
    %v294 = vmul.f32 %v271, %v286
    %v295 = vmul.f32 %v272, %v286
    %v296 = vmul.f32 %v273, %v286
    %v297 = vmul.f32 %v274, %v286
    %v298 = vmul.f32 %v275, %v286
    %v299 = vmul.f32 %v276, %v286
    %v300 = vmul.f32 %v277, %v286
    %v301 = vmul.f32 %v278, %v286
    %v302 = vmul.f32 %v279, %v286
    %v303 = vmul.f32 %v280, %v286
    %v304 = vld [vmem:[%s3] sm:$0x1]
    %v306 = vlaneseq
    %v307 = vshrl.u32 %v306, 7
    %v308 = vsub.s32 0, %v307
    %v309 = vrot.slane %v304, %v308
    %v311 = vadd.f32 %v288, %v309
    %v312 = vadd.f32 %v289, %v309
    %v313 = vadd.f32 %v290, %v309
    %v314 = vadd.f32 %v291, %v309
    %v315 = vadd.f32 %v292, %v309
    %v316 = vadd.f32 %v293, %v309
    %v317 = vadd.f32 %v294, %v309
    %v318 = vadd.f32 %v295, %v309
    %v319 = vadd.f32 %v296, %v309
    %v320 = vadd.f32 %v297, %v309
    %v321 = vadd.f32 %v298, %v309
    %v322 = vadd.f32 %v299, %v309
    %v323 = vadd.f32 %v300, %v309
    %v324 = vadd.f32 %v301, %v309
    %v325 = vadd.f32 %v302, %v309
    %v326 = vadd.f32 %v303, %v309
    %v327 = vmax.f32 %v311, 0.0
    %v328 = vmax.f32 %v312, 0.0
    %v329 = vmax.f32 %v313, 0.0
    %v330 = vmax.f32 %v314, 0.0
    %v331 = vmax.f32 %v315, 0.0
    %v332 = vmax.f32 %v316, 0.0
    %v333 = vmax.f32 %v317, 0.0
    %v334 = vmax.f32 %v318, 0.0
    %v335 = vmax.f32 %v319, 0.0
    %v336 = vmax.f32 %v320, 0.0
    %v337 = vmax.f32 %v321, 0.0
    %v338 = vmax.f32 %v322, 0.0
    %v339 = vmax.f32 %v323, 0.0
    %v340 = vmax.f32 %v324, 0.0
    %v341 = vmax.f32 %v325, 0.0
    %v342 = vmax.f32 %v326, 0.0
    %343 = vst [vmem:[%s4] sm:$0xff] %v327
    %344 = vst [vmem:[%s4 + $0x8] sm:$0xff] %v328
    %345 = vst [vmem:[%s4 + $0x10] sm:$0xff] %v329
    %346 = vst [vmem:[%s4 + $0x18] sm:$0xff] %v330
    %347 = vst [vmem:[%s4 + $0x20] sm:$0xff] %v331
    %348 = vst [vmem:[%s4 + $0x28] sm:$0xff] %v332
    %349 = vst [vmem:[%s4 + $0x30] sm:$0xff] %v333
    %350 = vst [vmem:[%s4 + $0x38] sm:$0xff] %v334
    %351 = vst [vmem:[%s4 + $0x40] sm:$0xff] %v335
    %352 = vst [vmem:[%s4 + $0x48] sm:$0xff] %v336
    %353 = vst [vmem:[%s4 + $0x50] sm:$0xff] %v337
    %354 = vst [vmem:[%s4 + $0x58] sm:$0xff] %v338
    %355 = vst [vmem:[%s4 + $0x60] sm:$0xff] %v339
    %356 = vst [vmem:[%s4 + $0x68] sm:$0xff] %v340
    %357 = vst [vmem:[%s4 + $0x70] sm:$0xff] %v341
    %358 = vst [vmem:[%s4 + $0x78] sm:$0xff] %v342
  $region25: #{basic_block_forward.3} parent=0 // pred_fallthru
    _
  // Predicated region
  $region26: #{basic_block_forward.3} parent=0 // pred_check
    _
  $region27: #{basic_block_forward.3} parent=0 // pred_check_branch
    %360 = sbr.rel (0) target = $region29
  $region28: #{basic_block_forward.3} parent=0 // pred_region
    _
  $region29: #{basic_block_forward.3} parent=0 // pred_fallthru
    _
  // Predicated region
  $region30: #{basic_block_forward.3} parent=0 // pred_check
    _
  $region31: #{basic_block_forward.3} parent=0 // pred_check_branch
    %362 = sbr.rel (0) target = $region33
  $region32: #{basic_block_forward.3} parent=0 // pred_region
    _
  $region33: #{basic_block_forward.3} parent=0 // pred_fallthru
    _

// kernel: basic_block_forward.4
$region0: #{basic_block_forward.4}
  #allocation0 [shape = 'u32[]', space=smem, size = 0x4, offset = 0x4, fixed_abs, tag = 'smem constant byte address 0x4 - core index']
  #allocation1 [shape = 'u32[144,128]{1,0:T(1,128)}', space=vmem, size = 0x12000, scoped, tag = 'internal scratch']
  #allocation2 [shape = 'f32[128,128]{1,0:T(8,128)}', space=vmem, size = 0x10000, scoped, tag = 'scratch operand']
  %s0 = inlined_call_operand.vmem [shape: f32[128,128], index: 0, kind: input, shape index: {}]
  %s1 = inlined_call_operand.vmem [shape: f32[128,128], index: 1, kind: input, shape index: {}]
  %s2 = inlined_call_operand.vmem [shape: f32[1,128], index: 2, kind: input, shape index: {}]
  %s3 = inlined_call_operand.vmem [shape: f32[1,128], index: 3, kind: input, shape index: {}]
  %s4 = inlined_call_operand.vmem [shape: f32[128,128], index: 4, kind: output, shape index: {}]
  %s5 = sld [smem:[#allocation0]]
  $region34: #{basic_block_forward.4} parent=0
    _
  %s7 = ssub.s32 1, %s5
  %s8 = scalar_select 0, %s7, %s5
  // Predicated region
  $region2: #{basic_block_forward.4} parent=0 // pred_check
    _
  $region3: #{basic_block_forward.4} parent=0 // pred_check_branch
    %10 = sbr.rel (0) target = $region5
  $region4: #{basic_block_forward.4} parent=0 // pred_region
    _
  $region5: #{basic_block_forward.4} parent=0 // pred_fallthru
    _
  // Predicated region
  $region6: #{basic_block_forward.4} parent=0 // pred_check
    _
  $region7: #{basic_block_forward.4} parent=0 // pred_check_branch
    %12 = sbr.rel (0) target = $region9
  $region8: #{basic_block_forward.4} parent=0 // pred_region
    _
  $region9: #{basic_block_forward.4} parent=0 // pred_fallthru
    _
  // Predicated region
  $region10: #{basic_block_forward.4} parent=0 // pred_check
    _
  $region11: #{basic_block_forward.4} parent=0 // pred_check_branch
    %14 = sbr.rel (0) target = $region13
  $region12: #{basic_block_forward.4} parent=0 // pred_region
    _
  $region13: #{basic_block_forward.4} parent=0 // pred_fallthru
    _
  // Predicated region
  $region14: #{basic_block_forward.4} parent=0 // pred_check
    _
  $region15: #{basic_block_forward.4} parent=0 // pred_check_branch
    %16 = sbr.rel (0) target = $region17
  $region16: #{basic_block_forward.4} parent=0 // pred_region
    _
  $region17: #{basic_block_forward.4} parent=0 // pred_fallthru
    _
  %p17 = scmp.eq.s32.totalorder 0, 0
  // Predicated region
  $region18: #{basic_block_forward.4} parent=0 // pred_check
    %p18 = pneg %p17
  $region19: #{basic_block_forward.4} parent=0 // pred_check_branch
    %20 = sbr.rel (%p18) target = $region21
  $region20: #{basic_block_forward.4} parent=0 // pred_region
    %21 = vst [vmem:[#allocation2] sm:$0xff] 0.0
    %22 = vst [vmem:[#allocation2 + $0x8] sm:$0xff] 0.0
    %23 = vst [vmem:[#allocation2 + $0x10] sm:$0xff] 0.0
    %24 = vst [vmem:[#allocation2 + $0x18] sm:$0xff] 0.0
    %25 = vst [vmem:[#allocation2 + $0x20] sm:$0xff] 0.0
    %26 = vst [vmem:[#allocation2 + $0x28] sm:$0xff] 0.0
    %27 = vst [vmem:[#allocation2 + $0x30] sm:$0xff] 0.0
    %28 = vst [vmem:[#allocation2 + $0x38] sm:$0xff] 0.0
    %29 = vst [vmem:[#allocation2 + $0x40] sm:$0xff] 0.0
    %30 = vst [vmem:[#allocation2 + $0x48] sm:$0xff] 0.0
    %31 = vst [vmem:[#allocation2 + $0x50] sm:$0xff] 0.0
    %32 = vst [vmem:[#allocation2 + $0x58] sm:$0xff] 0.0
    %33 = vst [vmem:[#allocation2 + $0x60] sm:$0xff] 0.0
    %34 = vst [vmem:[#allocation2 + $0x68] sm:$0xff] 0.0
    %35 = vst [vmem:[#allocation2 + $0x70] sm:$0xff] 0.0
    %36 = vst [vmem:[#allocation2 + $0x78] sm:$0xff] 0.0
  $region21: #{basic_block_forward.4} parent=0 // pred_fallthru
    _
  %v37 = vld [vmem:[#allocation2] sm:$0xff]
  %v38 = vld [vmem:[#allocation2 + $0x8] sm:$0xff]
  %v39 = vld [vmem:[#allocation2 + $0x10] sm:$0xff]
  %v40 = vld [vmem:[#allocation2 + $0x18] sm:$0xff]
  %v41 = vld [vmem:[#allocation2 + $0x20] sm:$0xff]
  %v42 = vld [vmem:[#allocation2 + $0x28] sm:$0xff]
  %v43 = vld [vmem:[#allocation2 + $0x30] sm:$0xff]
  %v44 = vld [vmem:[#allocation2 + $0x38] sm:$0xff]
  %v45 = vld [vmem:[#allocation2 + $0x40] sm:$0xff]
  %v46 = vld [vmem:[#allocation2 + $0x48] sm:$0xff]
  %v47 = vld [vmem:[#allocation2 + $0x50] sm:$0xff]
  %v48 = vld [vmem:[#allocation2 + $0x58] sm:$0xff]
  %v49 = vld [vmem:[#allocation2 + $0x60] sm:$0xff]
  %v50 = vld [vmem:[#allocation2 + $0x68] sm:$0xff]
  %v51 = vld [vmem:[#allocation2 + $0x70] sm:$0xff]
  %v52 = vld [vmem:[#allocation2 + $0x78] sm:$0xff]
  %v53 = vld [vmem:[%s0] sm:$0xff]
  %v54 = vld [vmem:[%s0 + $0x8] sm:$0xff]
  %v55 = vld [vmem:[%s0 + $0x10] sm:$0xff]
  %v56 = vld [vmem:[%s0 + $0x18] sm:$0xff]
  %v57 = vld [vmem:[%s0 + $0x20] sm:$0xff]
  %v58 = vld [vmem:[%s0 + $0x28] sm:$0xff]
  %v59 = vld [vmem:[%s0 + $0x30] sm:$0xff]
  %v60 = vld [vmem:[%s0 + $0x38] sm:$0xff]
  %v61 = vld [vmem:[%s0 + $0x40] sm:$0xff]
  %v62 = vld [vmem:[%s0 + $0x48] sm:$0xff]
  %v63 = vld [vmem:[%s0 + $0x50] sm:$0xff]
  %v64 = vld [vmem:[%s0 + $0x58] sm:$0xff]
  %v65 = vld [vmem:[%s0 + $0x60] sm:$0xff]
  %v66 = vld [vmem:[%s0 + $0x68] sm:$0xff]
  %v67 = vld [vmem:[%s0 + $0x70] sm:$0xff]
  %v68 = vld [vmem:[%s0 + $0x78] sm:$0xff]
  %v69 = vld [vmem:[%s1] sm:$0xff]
  %v70 = vld [vmem:[%s1 + $0x8] sm:$0xff]
  %v71 = vld [vmem:[%s1 + $0x10] sm:$0xff]
  %v72 = vld [vmem:[%s1 + $0x18] sm:$0xff]
  %v73 = vld [vmem:[%s1 + $0x20] sm:$0xff]
  %v74 = vld [vmem:[%s1 + $0x28] sm:$0xff]
  %v75 = vld [vmem:[%s1 + $0x30] sm:$0xff]
  %v76 = vld [vmem:[%s1 + $0x38] sm:$0xff]
  %v77 = vld [vmem:[%s1 + $0x40] sm:$0xff]
  %v78 = vld [vmem:[%s1 + $0x48] sm:$0xff]
  %v79 = vld [vmem:[%s1 + $0x50] sm:$0xff]
  %v80 = vld [vmem:[%s1 + $0x58] sm:$0xff]
  %v81 = vld [vmem:[%s1 + $0x60] sm:$0xff]
  %v82 = vld [vmem:[%s1 + $0x68] sm:$0xff]
  %v83 = vld [vmem:[%s1 + $0x70] sm:$0xff]
  %v84 = vld [vmem:[%s1 + $0x78] sm:$0xff]
  %85 = vmatprep.subr.mxu0 0.0
  %86 = vmatpush1.msra.mxu0 %v69
  %87 = vmatprep.subr.mxu0 0.0
  %88 = vmatpush1.msra.mxu0 %v70
  %89 = vmatprep.subr.mxu0 0.0
  %90 = vmatpush1.msra.mxu0 %v71
  %91 = vmatprep.subr.mxu0 0.0
  %92 = vmatpush1.msra.mxu0 %v72
  %93 = vmatprep.subr.mxu0 0.0
  %94 = vmatpush1.msra.mxu0 %v73
  %95 = vmatprep.subr.mxu0 0.0
  %96 = vmatpush1.msra.mxu0 %v74
  %97 = vmatprep.subr.mxu0 0.0
  %98 = vmatpush1.msra.mxu0 %v75
  %99 = vmatprep.subr.mxu0 0.0
  %100 = vmatpush1.msra.mxu0 %v76
  %101 = vmatprep.subr.mxu0 0.0
  %102 = vmatpush1.msra.mxu0 %v77
  %103 = vmatprep.subr.mxu0 0.0
  %104 = vmatpush1.msra.mxu0 %v78
  %105 = vmatprep.subr.mxu0 0.0
  %106 = vmatpush1.msra.mxu0 %v79
  %107 = vmatprep.subr.mxu0 0.0
  %108 = vmatpush1.msra.mxu0 %v80
  %109 = vmatprep.subr.mxu0 0.0
  %110 = vmatpush1.msra.mxu0 %v81
  %111 = vmatprep.subr.mxu0 0.0
  %112 = vmatpush1.msra.mxu0 %v82
  %113 = vmatprep.subr.mxu0 0.0
  %114 = vmatpush1.msra.mxu0 %v83
  %115 = vmatprep.subr.mxu0 0.0
  %116 = vmatpush1.msra.mxu0 %v84
  %117 = vmatprep.subr.mxu0 0.0
  %118 = vmatpush1.msra.mxu0 0.0
  %119 = vmatprep.subr.mxu0 0.0
  %120 = vmatpush1.msra.mxu0 0.0
  %121 = vmatprep.subr.mxu0 0.0
  %122 = vmatpush1.msra.mxu0 0.0
  %123 = vmatprep.subr.mxu0 0.0
  %124 = vmatpush1.msra.mxu0 0.0
  %125 = vmatprep.subr.mxu0 0.0
  %126 = vmatpush1.msra.mxu0 0.0
  %127 = vmatprep.subr.mxu0 0.0
  %128 = vmatpush1.msra.mxu0 0.0
  %129 = vmatprep.subr.mxu0 0.0
  %130 = vmatpush1.msra.mxu0 0.0
  %131 = vmatprep.subr.mxu0 0.0
  %132 = vmatpush1.msra.mxu0 0.0
  %133 = vmatprep.subr.mxu0 0.0
  %134 = vmatpush1.msra.mxu0 0.0
  %135 = vmatprep.subr.mxu0 0.0
  %136 = vmatpush1.msra.mxu0 0.0
  %137 = vmatprep.subr.mxu0 0.0
  %138 = vmatpush1.msra.mxu0 0.0
  %139 = vmatprep.subr.mxu0 0.0
  %140 = vmatpush1.msra.mxu0 0.0
  %141 = vmatprep.subr.mxu0 0.0
  %142 = vmatpush1.msra.mxu0 0.0
  %143 = vmatprep.subr.mxu0 0.0
  %144 = vmatpush1.msra.mxu0 0.0
  %145 = vmatprep.subr.mxu0 0.0
  %146 = vmatpush1.msra.mxu0 0.0
  %147 = vmatprep.subr.mxu0 0.0
  %148 = vmatpush1.msra.mxu0 0.0
  %149 = vmatprep.mubr.f32.mxu0 0.0
  %150 = vmatmul.mubr.f32.gmra.mrb[0].mxu0 %v53
  %v151 = vpop.f32.mrb[0].mxu0
  %v152 = vadd.f32 0.0, %v151
  %v153 = vpop.f32.mrb[0].mxu0
  %154 = vmatprep.mubr.f32.mxu0 0.0
  %155 = vmatmul.mubr.f32.gmra.mrb[0].mxu0 %v54
  %v156 = vpop.f32.mrb[0].mxu0
  %v157 = vadd.f32 0.0, %v156
  %v158 = vpop.f32.mrb[0].mxu0
  %159 = vmatprep.mubr.f32.mxu0 0.0
  %160 = vmatmul.mubr.f32.gmra.mrb[0].mxu0 %v55
  %v161 = vpop.f32.mrb[0].mxu0
  %v162 = vadd.f32 0.0, %v161
  %v163 = vpop.f32.mrb[0].mxu0
  %164 = vmatprep.mubr.f32.mxu0 0.0
  %165 = vmatmul.mubr.f32.gmra.mrb[0].mxu0 %v56
  %v166 = vpop.f32.mrb[0].mxu0
  %v167 = vadd.f32 0.0, %v166
  %v168 = vpop.f32.mrb[0].mxu0
  %169 = vmatprep.mubr.f32.mxu0 0.0
  %170 = vmatmul.mubr.f32.gmra.mrb[0].mxu0 %v57
  %v171 = vpop.f32.mrb[0].mxu0
  %v172 = vadd.f32 0.0, %v171
  %v173 = vpop.f32.mrb[0].mxu0
  %174 = vmatprep.mubr.f32.mxu0 0.0
  %175 = vmatmul.mubr.f32.gmra.mrb[0].mxu0 %v58
  %v176 = vpop.f32.mrb[0].mxu0
  %v177 = vadd.f32 0.0, %v176
  %v178 = vpop.f32.mrb[0].mxu0
  %179 = vmatprep.mubr.f32.mxu0 0.0
  %180 = vmatmul.mubr.f32.gmra.mrb[0].mxu0 %v59
  %v181 = vpop.f32.mrb[0].mxu0
  %v182 = vadd.f32 0.0, %v181
  %v183 = vpop.f32.mrb[0].mxu0
  %184 = vmatprep.mubr.f32.mxu0 0.0
  %185 = vmatmul.mubr.f32.gmra.mrb[0].mxu0 %v60
  %v186 = vpop.f32.mrb[0].mxu0
  %v187 = vadd.f32 0.0, %v186
  %v188 = vpop.f32.mrb[0].mxu0
  %189 = vmatprep.mubr.f32.mxu0 0.0
  %190 = vmatmul.mubr.f32.gmra.mrb[0].mxu0 %v61
  %v191 = vpop.f32.mrb[0].mxu0
  %v192 = vadd.f32 0.0, %v191
  %v193 = vpop.f32.mrb[0].mxu0
  %194 = vmatprep.mubr.f32.mxu0 0.0
  %195 = vmatmul.mubr.f32.gmra.mrb[0].mxu0 %v62
  %v196 = vpop.f32.mrb[0].mxu0
  %v197 = vadd.f32 0.0, %v196
  %v198 = vpop.f32.mrb[0].mxu0
  %199 = vmatprep.mubr.f32.mxu0 0.0
  %200 = vmatmul.mubr.f32.gmra.mrb[0].mxu0 %v63
  %v201 = vpop.f32.mrb[0].mxu0
  %v202 = vadd.f32 0.0, %v201
  %v203 = vpop.f32.mrb[0].mxu0
  %204 = vmatprep.mubr.f32.mxu0 0.0
  %205 = vmatmul.mubr.f32.gmra.mrb[0].mxu0 %v64
  %v206 = vpop.f32.mrb[0].mxu0
  %v207 = vadd.f32 0.0, %v206
  %v208 = vpop.f32.mrb[0].mxu0
  %209 = vmatprep.mubr.f32.mxu0 0.0
  %210 = vmatmul.mubr.f32.gmra.mrb[0].mxu0 %v65
  %v211 = vpop.f32.mrb[0].mxu0
  %v212 = vadd.f32 0.0, %v211
  %v213 = vpop.f32.mrb[0].mxu0
  %214 = vmatprep.mubr.f32.mxu0 0.0
  %215 = vmatmul.mubr.f32.gmra.mrb[0].mxu0 %v66
  %v216 = vpop.f32.mrb[0].mxu0
  %v217 = vadd.f32 0.0, %v216
  %v218 = vpop.f32.mrb[0].mxu0
  %219 = vmatprep.mubr.f32.mxu0 0.0
  %220 = vmatmul.mubr.f32.gmra.mrb[0].mxu0 %v67
  %v221 = vpop.f32.mrb[0].mxu0
  %v222 = vadd.f32 0.0, %v221
  %v223 = vpop.f32.mrb[0].mxu0
  %224 = vmatprep.mubr.f32.mxu0 0.0
  %225 = vmatmul.mubr.f32.gmra.mrb[0].mxu0 %v68
  %v226 = vpop.f32.mrb[0].mxu0
  %v227 = vadd.f32 0.0, %v226
  %v228 = vpop.f32.mrb[0].mxu0
  %229 = vdwg.mxu0
  %v230 = vadd.f32 %v37, %v152
  %v231 = vadd.f32 %v38, %v157
  %v232 = vadd.f32 %v39, %v162
  %v233 = vadd.f32 %v40, %v167
  %v234 = vadd.f32 %v41, %v172
  %v235 = vadd.f32 %v42, %v177
  %v236 = vadd.f32 %v43, %v182
  %v237 = vadd.f32 %v44, %v187
  %v238 = vadd.f32 %v45, %v192
  %v239 = vadd.f32 %v46, %v197
  %v240 = vadd.f32 %v47, %v202
  %v241 = vadd.f32 %v48, %v207
  %v242 = vadd.f32 %v49, %v212
  %v243 = vadd.f32 %v50, %v217
  %v244 = vadd.f32 %v51, %v222
  %v245 = vadd.f32 %v52, %v227
  %246 = vst [vmem:[#allocation2] sm:$0xff] %v230
  %247 = vst [vmem:[#allocation2 + $0x8] sm:$0xff] %v231
  %248 = vst [vmem:[#allocation2 + $0x10] sm:$0xff] %v232
  %249 = vst [vmem:[#allocation2 + $0x18] sm:$0xff] %v233
  %250 = vst [vmem:[#allocation2 + $0x20] sm:$0xff] %v234
  %251 = vst [vmem:[#allocation2 + $0x28] sm:$0xff] %v235
  %252 = vst [vmem:[#allocation2 + $0x30] sm:$0xff] %v236
  %253 = vst [vmem:[#allocation2 + $0x38] sm:$0xff] %v237
  %254 = vst [vmem:[#allocation2 + $0x40] sm:$0xff] %v238
  %255 = vst [vmem:[#allocation2 + $0x48] sm:$0xff] %v239
  %256 = vst [vmem:[#allocation2 + $0x50] sm:$0xff] %v240
  %257 = vst [vmem:[#allocation2 + $0x58] sm:$0xff] %v241
  %258 = vst [vmem:[#allocation2 + $0x60] sm:$0xff] %v242
  %259 = vst [vmem:[#allocation2 + $0x68] sm:$0xff] %v243
  %260 = vst [vmem:[#allocation2 + $0x70] sm:$0xff] %v244
  %261 = vst [vmem:[#allocation2 + $0x78] sm:$0xff] %v245
  // Predicated region
  $region22: #{basic_block_forward.4} parent=0 // pred_check
    %p262 = pneg %p17
  $region23: #{basic_block_forward.4} parent=0 // pred_check_branch
    %264 = sbr.rel (%p262) target = $region25
  $region24: #{basic_block_forward.4} parent=0 // pred_region
    %v265 = vld [vmem:[#allocation2] sm:$0xff]
    %v266 = vld [vmem:[#allocation2 + $0x8] sm:$0xff]
    %v267 = vld [vmem:[#allocation2 + $0x10] sm:$0xff]
    %v268 = vld [vmem:[#allocation2 + $0x18] sm:$0xff]
    %v269 = vld [vmem:[#allocation2 + $0x20] sm:$0xff]
    %v270 = vld [vmem:[#allocation2 + $0x28] sm:$0xff]
    %v271 = vld [vmem:[#allocation2 + $0x30] sm:$0xff]
    %v272 = vld [vmem:[#allocation2 + $0x38] sm:$0xff]
    %v273 = vld [vmem:[#allocation2 + $0x40] sm:$0xff]
    %v274 = vld [vmem:[#allocation2 + $0x48] sm:$0xff]
    %v275 = vld [vmem:[#allocation2 + $0x50] sm:$0xff]
    %v276 = vld [vmem:[#allocation2 + $0x58] sm:$0xff]
    %v277 = vld [vmem:[#allocation2 + $0x60] sm:$0xff]
    %v278 = vld [vmem:[#allocation2 + $0x68] sm:$0xff]
    %v279 = vld [vmem:[#allocation2 + $0x70] sm:$0xff]
    %v280 = vld [vmem:[#allocation2 + $0x78] sm:$0xff]
    %v281 = vld [vmem:[%s2] sm:$0x1]
    %v283 = vlaneseq
    %v284 = vshrl.u32 %v283, 7
    %v285 = vsub.s32 0, %v284
    %v286 = vrot.slane %v281, %v285
    %v288 = vmul.f32 %v265, %v286
    %v289 = vmul.f32 %v266, %v286
    %v290 = vmul.f32 %v267, %v286
    %v291 = vmul.f32 %v268, %v286
    %v292 = vmul.f32 %v269, %v286
    %v293 = vmul.f32 %v270, %v286
    %v294 = vmul.f32 %v271, %v286
    %v295 = vmul.f32 %v272, %v286
    %v296 = vmul.f32 %v273, %v286
    %v297 = vmul.f32 %v274, %v286
    %v298 = vmul.f32 %v275, %v286
    %v299 = vmul.f32 %v276, %v286
    %v300 = vmul.f32 %v277, %v286
    %v301 = vmul.f32 %v278, %v286
    %v302 = vmul.f32 %v279, %v286
    %v303 = vmul.f32 %v280, %v286
    %v304 = vld [vmem:[%s3] sm:$0x1]
    %v306 = vlaneseq
    %v307 = vshrl.u32 %v306, 7
    %v308 = vsub.s32 0, %v307
    %v309 = vrot.slane %v304, %v308
    %v311 = vadd.f32 %v288, %v309
    %v312 = vadd.f32 %v289, %v309
    %v313 = vadd.f32 %v290, %v309
    %v314 = vadd.f32 %v291, %v309
    %v315 = vadd.f32 %v292, %v309
    %v316 = vadd.f32 %v293, %v309
    %v317 = vadd.f32 %v294, %v309
    %v318 = vadd.f32 %v295, %v309
    %v319 = vadd.f32 %v296, %v309
    %v320 = vadd.f32 %v297, %v309
    %v321 = vadd.f32 %v298, %v309
    %v322 = vadd.f32 %v299, %v309
    %v323 = vadd.f32 %v300, %v309
    %v324 = vadd.f32 %v301, %v309
    %v325 = vadd.f32 %v302, %v309
    %v326 = vadd.f32 %v303, %v309
    %327 = vst [vmem:[%s4] sm:$0xff] %v311
    %328 = vst [vmem:[%s4 + $0x8] sm:$0xff] %v312
    %329 = vst [vmem:[%s4 + $0x10] sm:$0xff] %v313
    %330 = vst [vmem:[%s4 + $0x18] sm:$0xff] %v314
    %331 = vst [vmem:[%s4 + $0x20] sm:$0xff] %v315
    %332 = vst [vmem:[%s4 + $0x28] sm:$0xff] %v316
    %333 = vst [vmem:[%s4 + $0x30] sm:$0xff] %v317
    %334 = vst [vmem:[%s4 + $0x38] sm:$0xff] %v318
    %335 = vst [vmem:[%s4 + $0x40] sm:$0xff] %v319
    %336 = vst [vmem:[%s4 + $0x48] sm:$0xff] %v320
    %337 = vst [vmem:[%s4 + $0x50] sm:$0xff] %v321
    %338 = vst [vmem:[%s4 + $0x58] sm:$0xff] %v322
    %339 = vst [vmem:[%s4 + $0x60] sm:$0xff] %v323
    %340 = vst [vmem:[%s4 + $0x68] sm:$0xff] %v324
    %341 = vst [vmem:[%s4 + $0x70] sm:$0xff] %v325
    %342 = vst [vmem:[%s4 + $0x78] sm:$0xff] %v326
  $region25: #{basic_block_forward.4} parent=0 // pred_fallthru
    _
  // Predicated region
  $region26: #{basic_block_forward.4} parent=0 // pred_check
    _
  $region27: #{basic_block_forward.4} parent=0 // pred_check_branch
    %344 = sbr.rel (0) target = $region29
  $region28: #{basic_block_forward.4} parent=0 // pred_region
    _
  $region29: #{basic_block_forward.4} parent=0 // pred_fallthru
    _
  // Predicated region
  $region30: #{basic_block_forward.4} parent=0 // pred_check
    _
  $region31: #{basic_block_forward.4} parent=0 // pred_check_branch
    %346 = sbr.rel (0) target = $region33
  $region32: #{basic_block_forward.4} parent=0 // pred_region
    _
  $region33: #{basic_block_forward.4} parent=0 // pred_fallthru
    _

// kernel: basic_block_forward.5
$region0: #{basic_block_forward.5}
  #allocation0 [shape = 'u32[]', space=smem, size = 0x4, offset = 0x4, fixed_abs, tag = 'smem constant byte address 0x4 - core index']
  #allocation1 [shape = 'u32[144,128]{1,0:T(1,128)}', space=vmem, size = 0x12000, scoped, tag = 'internal scratch']
  #allocation2 [shape = 'f32[128,128]{1,0:T(8,128)}', space=vmem, size = 0x10000, scoped, tag = 'scratch operand']
  %s0 = inlined_call_operand.vmem [shape: f32[128,128], index: 0, kind: input, shape index: {}]
  %s1 = inlined_call_operand.vmem [shape: f32[128,128], index: 1, kind: input, shape index: {}]
  %s2 = inlined_call_operand.vmem [shape: f32[1,128], index: 2, kind: input, shape index: {}]
  %s3 = inlined_call_operand.vmem [shape: f32[1,128], index: 3, kind: input, shape index: {}]
  %s4 = inlined_call_operand.vmem [shape: f32[128,128], index: 4, kind: input, shape index: {}]
  %s5 = inlined_call_operand.vmem [shape: f32[128,128], index: 5, kind: output, shape index: {}]
  %s6 = sld [smem:[#allocation0]]
  $region38: #{basic_block_forward.5} parent=0
    _
  %s8 = ssub.s32 1, %s6
  %s9 = scalar_select 0, %s8, %s6
  // Predicated region
  $region2: #{basic_block_forward.5} parent=0 // pred_check
    _
  $region3: #{basic_block_forward.5} parent=0 // pred_check_branch
    %11 = sbr.rel (0) target = $region5
  $region4: #{basic_block_forward.5} parent=0 // pred_region
    _
  $region5: #{basic_block_forward.5} parent=0 // pred_fallthru
    _
  // Predicated region
  $region6: #{basic_block_forward.5} parent=0 // pred_check
    _
  $region7: #{basic_block_forward.5} parent=0 // pred_check_branch
    %13 = sbr.rel (0) target = $region9
  $region8: #{basic_block_forward.5} parent=0 // pred_region
    _
  $region9: #{basic_block_forward.5} parent=0 // pred_fallthru
    _
  // Predicated region
  $region10: #{basic_block_forward.5} parent=0 // pred_check
    _
  $region11: #{basic_block_forward.5} parent=0 // pred_check_branch
    %15 = sbr.rel (0) target = $region13
  $region12: #{basic_block_forward.5} parent=0 // pred_region
    _
  $region13: #{basic_block_forward.5} parent=0 // pred_fallthru
    _
  // Predicated region
  $region14: #{basic_block_forward.5} parent=0 // pred_check
    _
  $region15: #{basic_block_forward.5} parent=0 // pred_check_branch
    %17 = sbr.rel (0) target = $region17
  $region16: #{basic_block_forward.5} parent=0 // pred_region
    _
  $region17: #{basic_block_forward.5} parent=0 // pred_fallthru
    _
  // Predicated region
  $region18: #{basic_block_forward.5} parent=0 // pred_check
    _
  $region19: #{basic_block_forward.5} parent=0 // pred_check_branch
    %19 = sbr.rel (0) target = $region21
  $region20: #{basic_block_forward.5} parent=0 // pred_region
    _
  $region21: #{basic_block_forward.5} parent=0 // pred_fallthru
    _
  %p20 = scmp.eq.s32.totalorder 0, 0
  // Predicated region
  $region22: #{basic_block_forward.5} parent=0 // pred_check
    %p21 = pneg %p20
  $region23: #{basic_block_forward.5} parent=0 // pred_check_branch
    %23 = sbr.rel (%p21) target = $region25
  $region24: #{basic_block_forward.5} parent=0 // pred_region
    %24 = vst [vmem:[#allocation2] sm:$0xff] 0.0
    %25 = vst [vmem:[#allocation2 + $0x8] sm:$0xff] 0.0
    %26 = vst [vmem:[#allocation2 + $0x10] sm:$0xff] 0.0
    %27 = vst [vmem:[#allocation2 + $0x18] sm:$0xff] 0.0
    %28 = vst [vmem:[#allocation2 + $0x20] sm:$0xff] 0.0
    %29 = vst [vmem:[#allocation2 + $0x28] sm:$0xff] 0.0
    %30 = vst [vmem:[#allocation2 + $0x30] sm:$0xff] 0.0
    %31 = vst [vmem:[#allocation2 + $0x38] sm:$0xff] 0.0
    %32 = vst [vmem:[#allocation2 + $0x40] sm:$0xff] 0.0
    %33 = vst [vmem:[#allocation2 + $0x48] sm:$0xff] 0.0
    %34 = vst [vmem:[#allocation2 + $0x50] sm:$0xff] 0.0
    %35 = vst [vmem:[#allocation2 + $0x58] sm:$0xff] 0.0
    %36 = vst [vmem:[#allocation2 + $0x60] sm:$0xff] 0.0
    %37 = vst [vmem:[#allocation2 + $0x68] sm:$0xff] 0.0
    %38 = vst [vmem:[#allocation2 + $0x70] sm:$0xff] 0.0
    %39 = vst [vmem:[#allocation2 + $0x78] sm:$0xff] 0.0
  $region25: #{basic_block_forward.5} parent=0 // pred_fallthru
    _
  %v40 = vld [vmem:[#allocation2] sm:$0xff]
  %v41 = vld [vmem:[#allocation2 + $0x8] sm:$0xff]
  %v42 = vld [vmem:[#allocation2 + $0x10] sm:$0xff]
  %v43 = vld [vmem:[#allocation2 + $0x18] sm:$0xff]
  %v44 = vld [vmem:[#allocation2 + $0x20] sm:$0xff]
  %v45 = vld [vmem:[#allocation2 + $0x28] sm:$0xff]
  %v46 = vld [vmem:[#allocation2 + $0x30] sm:$0xff]
  %v47 = vld [vmem:[#allocation2 + $0x38] sm:$0xff]
  %v48 = vld [vmem:[#allocation2 + $0x40] sm:$0xff]
  %v49 = vld [vmem:[#allocation2 + $0x48] sm:$0xff]
  %v50 = vld [vmem:[#allocation2 + $0x50] sm:$0xff]
  %v51 = vld [vmem:[#allocation2 + $0x58] sm:$0xff]
  %v52 = vld [vmem:[#allocation2 + $0x60] sm:$0xff]
  %v53 = vld [vmem:[#allocation2 + $0x68] sm:$0xff]
  %v54 = vld [vmem:[#allocation2 + $0x70] sm:$0xff]
  %v55 = vld [vmem:[#allocation2 + $0x78] sm:$0xff]
  %v56 = vld [vmem:[%s0] sm:$0xff]
  %v57 = vld [vmem:[%s0 + $0x8] sm:$0xff]
  %v58 = vld [vmem:[%s0 + $0x10] sm:$0xff]
  %v59 = vld [vmem:[%s0 + $0x18] sm:$0xff]
  %v60 = vld [vmem:[%s0 + $0x20] sm:$0xff]
  %v61 = vld [vmem:[%s0 + $0x28] sm:$0xff]
  %v62 = vld [vmem:[%s0 + $0x30] sm:$0xff]
  %v63 = vld [vmem:[%s0 + $0x38] sm:$0xff]
  %v64 = vld [vmem:[%s0 + $0x40] sm:$0xff]
  %v65 = vld [vmem:[%s0 + $0x48] sm:$0xff]
  %v66 = vld [vmem:[%s0 + $0x50] sm:$0xff]
  %v67 = vld [vmem:[%s0 + $0x58] sm:$0xff]
  %v68 = vld [vmem:[%s0 + $0x60] sm:$0xff]
  %v69 = vld [vmem:[%s0 + $0x68] sm:$0xff]
  %v70 = vld [vmem:[%s0 + $0x70] sm:$0xff]
  %v71 = vld [vmem:[%s0 + $0x78] sm:$0xff]
  %v72 = vld [vmem:[%s1] sm:$0xff]
  %v73 = vld [vmem:[%s1 + $0x8] sm:$0xff]
  %v74 = vld [vmem:[%s1 + $0x10] sm:$0xff]
  %v75 = vld [vmem:[%s1 + $0x18] sm:$0xff]
  %v76 = vld [vmem:[%s1 + $0x20] sm:$0xff]
  %v77 = vld [vmem:[%s1 + $0x28] sm:$0xff]
  %v78 = vld [vmem:[%s1 + $0x30] sm:$0xff]
  %v79 = vld [vmem:[%s1 + $0x38] sm:$0xff]
  %v80 = vld [vmem:[%s1 + $0x40] sm:$0xff]
  %v81 = vld [vmem:[%s1 + $0x48] sm:$0xff]
  %v82 = vld [vmem:[%s1 + $0x50] sm:$0xff]
  %v83 = vld [vmem:[%s1 + $0x58] sm:$0xff]
  %v84 = vld [vmem:[%s1 + $0x60] sm:$0xff]
  %v85 = vld [vmem:[%s1 + $0x68] sm:$0xff]
  %v86 = vld [vmem:[%s1 + $0x70] sm:$0xff]
  %v87 = vld [vmem:[%s1 + $0x78] sm:$0xff]
  %88 = vmatprep.subr.mxu0 0.0
  %89 = vmatpush1.msra.mxu0 %v72
  %90 = vmatprep.subr.mxu0 0.0
  %91 = vmatpush1.msra.mxu0 %v73
  %92 = vmatprep.subr.mxu0 0.0
  %93 = vmatpush1.msra.mxu0 %v74
  %94 = vmatprep.subr.mxu0 0.0
  %95 = vmatpush1.msra.mxu0 %v75
  %96 = vmatprep.subr.mxu0 0.0
  %97 = vmatpush1.msra.mxu0 %v76
  %98 = vmatprep.subr.mxu0 0.0
  %99 = vmatpush1.msra.mxu0 %v77
  %100 = vmatprep.subr.mxu0 0.0
  %101 = vmatpush1.msra.mxu0 %v78
  %102 = vmatprep.subr.mxu0 0.0
  %103 = vmatpush1.msra.mxu0 %v79
  %104 = vmatprep.subr.mxu0 0.0
  %105 = vmatpush1.msra.mxu0 %v80
  %106 = vmatprep.subr.mxu0 0.0
  %107 = vmatpush1.msra.mxu0 %v81
  %108 = vmatprep.subr.mxu0 0.0
  %109 = vmatpush1.msra.mxu0 %v82
  %110 = vmatprep.subr.mxu0 0.0
  %111 = vmatpush1.msra.mxu0 %v83
  %112 = vmatprep.subr.mxu0 0.0
  %113 = vmatpush1.msra.mxu0 %v84
  %114 = vmatprep.subr.mxu0 0.0
  %115 = vmatpush1.msra.mxu0 %v85
  %116 = vmatprep.subr.mxu0 0.0
  %117 = vmatpush1.msra.mxu0 %v86
  %118 = vmatprep.subr.mxu0 0.0
  %119 = vmatpush1.msra.mxu0 %v87
  %120 = vmatprep.subr.mxu0 0.0
  %121 = vmatpush1.msra.mxu0 0.0
  %122 = vmatprep.subr.mxu0 0.0
  %123 = vmatpush1.msra.mxu0 0.0
  %124 = vmatprep.subr.mxu0 0.0
  %125 = vmatpush1.msra.mxu0 0.0
  %126 = vmatprep.subr.mxu0 0.0
  %127 = vmatpush1.msra.mxu0 0.0
  %128 = vmatprep.subr.mxu0 0.0
  %129 = vmatpush1.msra.mxu0 0.0
  %130 = vmatprep.subr.mxu0 0.0
  %131 = vmatpush1.msra.mxu0 0.0
  %132 = vmatprep.subr.mxu0 0.0
  %133 = vmatpush1.msra.mxu0 0.0
  %134 = vmatprep.subr.mxu0 0.0
  %135 = vmatpush1.msra.mxu0 0.0
  %136 = vmatprep.subr.mxu0 0.0
  %137 = vmatpush1.msra.mxu0 0.0
  %138 = vmatprep.subr.mxu0 0.0
  %139 = vmatpush1.msra.mxu0 0.0
  %140 = vmatprep.subr.mxu0 0.0
  %141 = vmatpush1.msra.mxu0 0.0
  %142 = vmatprep.subr.mxu0 0.0
  %143 = vmatpush1.msra.mxu0 0.0
  %144 = vmatprep.subr.mxu0 0.0
  %145 = vmatpush1.msra.mxu0 0.0
  %146 = vmatprep.subr.mxu0 0.0
  %147 = vmatpush1.msra.mxu0 0.0
  %148 = vmatprep.subr.mxu0 0.0
  %149 = vmatpush1.msra.mxu0 0.0
  %150 = vmatprep.subr.mxu0 0.0
  %151 = vmatpush1.msra.mxu0 0.0
  %152 = vmatprep.mubr.f32.mxu0 0.0
  %153 = vmatmul.mubr.f32.gmra.mrb[0].mxu0 %v56
  %v154 = vpop.f32.mrb[0].mxu0
  %v155 = vadd.f32 0.0, %v154
  %v156 = vpop.f32.mrb[0].mxu0
  %157 = vmatprep.mubr.f32.mxu0 0.0
  %158 = vmatmul.mubr.f32.gmra.mrb[0].mxu0 %v57
  %v159 = vpop.f32.mrb[0].mxu0
  %v160 = vadd.f32 0.0, %v159
  %v161 = vpop.f32.mrb[0].mxu0
  %162 = vmatprep.mubr.f32.mxu0 0.0
  %163 = vmatmul.mubr.f32.gmra.mrb[0].mxu0 %v58
  %v164 = vpop.f32.mrb[0].mxu0
  %v165 = vadd.f32 0.0, %v164
  %v166 = vpop.f32.mrb[0].mxu0
  %167 = vmatprep.mubr.f32.mxu0 0.0
  %168 = vmatmul.mubr.f32.gmra.mrb[0].mxu0 %v59
  %v169 = vpop.f32.mrb[0].mxu0
  %v170 = vadd.f32 0.0, %v169
  %v171 = vpop.f32.mrb[0].mxu0
  %172 = vmatprep.mubr.f32.mxu0 0.0
  %173 = vmatmul.mubr.f32.gmra.mrb[0].mxu0 %v60
  %v174 = vpop.f32.mrb[0].mxu0
  %v175 = vadd.f32 0.0, %v174
  %v176 = vpop.f32.mrb[0].mxu0
  %177 = vmatprep.mubr.f32.mxu0 0.0
  %178 = vmatmul.mubr.f32.gmra.mrb[0].mxu0 %v61
  %v179 = vpop.f32.mrb[0].mxu0
  %v180 = vadd.f32 0.0, %v179
  %v181 = vpop.f32.mrb[0].mxu0
  %182 = vmatprep.mubr.f32.mxu0 0.0
  %183 = vmatmul.mubr.f32.gmra.mrb[0].mxu0 %v62
  %v184 = vpop.f32.mrb[0].mxu0
  %v185 = vadd.f32 0.0, %v184
  %v186 = vpop.f32.mrb[0].mxu0
  %187 = vmatprep.mubr.f32.mxu0 0.0
  %188 = vmatmul.mubr.f32.gmra.mrb[0].mxu0 %v63
  %v189 = vpop.f32.mrb[0].mxu0
  %v190 = vadd.f32 0.0, %v189
  %v191 = vpop.f32.mrb[0].mxu0
  %192 = vmatprep.mubr.f32.mxu0 0.0
  %193 = vmatmul.mubr.f32.gmra.mrb[0].mxu0 %v64
  %v194 = vpop.f32.mrb[0].mxu0
  %v195 = vadd.f32 0.0, %v194
  %v196 = vpop.f32.mrb[0].mxu0
  %197 = vmatprep.mubr.f32.mxu0 0.0
  %198 = vmatmul.mubr.f32.gmra.mrb[0].mxu0 %v65
  %v199 = vpop.f32.mrb[0].mxu0
  %v200 = vadd.f32 0.0, %v199
  %v201 = vpop.f32.mrb[0].mxu0
  %202 = vmatprep.mubr.f32.mxu0 0.0
  %203 = vmatmul.mubr.f32.gmra.mrb[0].mxu0 %v66
  %v204 = vpop.f32.mrb[0].mxu0
  %v205 = vadd.f32 0.0, %v204
  %v206 = vpop.f32.mrb[0].mxu0
  %207 = vmatprep.mubr.f32.mxu0 0.0
  %208 = vmatmul.mubr.f32.gmra.mrb[0].mxu0 %v67
  %v209 = vpop.f32.mrb[0].mxu0
  %v210 = vadd.f32 0.0, %v209
  %v211 = vpop.f32.mrb[0].mxu0
  %212 = vmatprep.mubr.f32.mxu0 0.0
  %213 = vmatmul.mubr.f32.gmra.mrb[0].mxu0 %v68
  %v214 = vpop.f32.mrb[0].mxu0
  %v215 = vadd.f32 0.0, %v214
  %v216 = vpop.f32.mrb[0].mxu0
  %217 = vmatprep.mubr.f32.mxu0 0.0
  %218 = vmatmul.mubr.f32.gmra.mrb[0].mxu0 %v69
  %v219 = vpop.f32.mrb[0].mxu0
  %v220 = vadd.f32 0.0, %v219
  %v221 = vpop.f32.mrb[0].mxu0
  %222 = vmatprep.mubr.f32.mxu0 0.0
  %223 = vmatmul.mubr.f32.gmra.mrb[0].mxu0 %v70
  %v224 = vpop.f32.mrb[0].mxu0
  %v225 = vadd.f32 0.0, %v224
  %v226 = vpop.f32.mrb[0].mxu0
  %227 = vmatprep.mubr.f32.mxu0 0.0
  %228 = vmatmul.mubr.f32.gmra.mrb[0].mxu0 %v71
  %v229 = vpop.f32.mrb[0].mxu0
  %v230 = vadd.f32 0.0, %v229
  %v231 = vpop.f32.mrb[0].mxu0
  %232 = vdwg.mxu0
  %v233 = vadd.f32 %v40, %v155
  %v234 = vadd.f32 %v41, %v160
  %v235 = vadd.f32 %v42, %v165
  %v236 = vadd.f32 %v43, %v170
  %v237 = vadd.f32 %v44, %v175
  %v238 = vadd.f32 %v45, %v180
  %v239 = vadd.f32 %v46, %v185
  %v240 = vadd.f32 %v47, %v190
  %v241 = vadd.f32 %v48, %v195
  %v242 = vadd.f32 %v49, %v200
  %v243 = vadd.f32 %v50, %v205
  %v244 = vadd.f32 %v51, %v210
  %v245 = vadd.f32 %v52, %v215
  %v246 = vadd.f32 %v53, %v220
  %v247 = vadd.f32 %v54, %v225
  %v248 = vadd.f32 %v55, %v230
  %249 = vst [vmem:[#allocation2] sm:$0xff] %v233
  %250 = vst [vmem:[#allocation2 + $0x8] sm:$0xff] %v234
  %251 = vst [vmem:[#allocation2 + $0x10] sm:$0xff] %v235
  %252 = vst [vmem:[#allocation2 + $0x18] sm:$0xff] %v236
  %253 = vst [vmem:[#allocation2 + $0x20] sm:$0xff] %v237
  %254 = vst [vmem:[#allocation2 + $0x28] sm:$0xff] %v238
  %255 = vst [vmem:[#allocation2 + $0x30] sm:$0xff] %v239
  %256 = vst [vmem:[#allocation2 + $0x38] sm:$0xff] %v240
  %257 = vst [vmem:[#allocation2 + $0x40] sm:$0xff] %v241
  %258 = vst [vmem:[#allocation2 + $0x48] sm:$0xff] %v242
  %259 = vst [vmem:[#allocation2 + $0x50] sm:$0xff] %v243
  %260 = vst [vmem:[#allocation2 + $0x58] sm:$0xff] %v244
  %261 = vst [vmem:[#allocation2 + $0x60] sm:$0xff] %v245
  %262 = vst [vmem:[#allocation2 + $0x68] sm:$0xff] %v246
  %263 = vst [vmem:[#allocation2 + $0x70] sm:$0xff] %v247
  %264 = vst [vmem:[#allocation2 + $0x78] sm:$0xff] %v248
  // Predicated region
  $region26: #{basic_block_forward.5} parent=0 // pred_check
    %p265 = pneg %p20
  $region27: #{basic_block_forward.5} parent=0 // pred_check_branch
    %267 = sbr.rel (%p265) target = $region29
  $region28: #{basic_block_forward.5} parent=0 // pred_region
    %v268 = vld [vmem:[#allocation2] sm:$0xff]
    %v269 = vld [vmem:[#allocation2 + $0x8] sm:$0xff]
    %v270 = vld [vmem:[#allocation2 + $0x10] sm:$0xff]
    %v271 = vld [vmem:[#allocation2 + $0x18] sm:$0xff]
    %v272 = vld [vmem:[#allocation2 + $0x20] sm:$0xff]
    %v273 = vld [vmem:[#allocation2 + $0x28] sm:$0xff]
    %v274 = vld [vmem:[#allocation2 + $0x30] sm:$0xff]
    %v275 = vld [vmem:[#allocation2 + $0x38] sm:$0xff]
    %v276 = vld [vmem:[#allocation2 + $0x40] sm:$0xff]
    %v277 = vld [vmem:[#allocation2 + $0x48] sm:$0xff]
    %v278 = vld [vmem:[#allocation2 + $0x50] sm:$0xff]
    %v279 = vld [vmem:[#allocation2 + $0x58] sm:$0xff]
    %v280 = vld [vmem:[#allocation2 + $0x60] sm:$0xff]
    %v281 = vld [vmem:[#allocation2 + $0x68] sm:$0xff]
    %v282 = vld [vmem:[#allocation2 + $0x70] sm:$0xff]
    %v283 = vld [vmem:[#allocation2 + $0x78] sm:$0xff]
    %v284 = vld [vmem:[%s2] sm:$0x1]
    %v286 = vlaneseq
    %v287 = vshrl.u32 %v286, 7
    %v288 = vsub.s32 0, %v287
    %v289 = vrot.slane %v284, %v288
    %v291 = vmul.f32 %v268, %v289
    %v292 = vmul.f32 %v269, %v289
    %v293 = vmul.f32 %v270, %v289
    %v294 = vmul.f32 %v271, %v289
    %v295 = vmul.f32 %v272, %v289
    %v296 = vmul.f32 %v273, %v289
    %v297 = vmul.f32 %v274, %v289
    %v298 = vmul.f32 %v275, %v289
    %v299 = vmul.f32 %v276, %v289
    %v300 = vmul.f32 %v277, %v289
    %v301 = vmul.f32 %v278, %v289
    %v302 = vmul.f32 %v279, %v289
    %v303 = vmul.f32 %v280, %v289
    %v304 = vmul.f32 %v281, %v289
    %v305 = vmul.f32 %v282, %v289
    %v306 = vmul.f32 %v283, %v289
    %v307 = vld [vmem:[%s3] sm:$0x1]
    %v309 = vlaneseq
    %v310 = vshrl.u32 %v309, 7
    %v311 = vsub.s32 0, %v310
    %v312 = vrot.slane %v307, %v311
    %v314 = vadd.f32 %v291, %v312
    %v315 = vadd.f32 %v292, %v312
    %v316 = vadd.f32 %v293, %v312
    %v317 = vadd.f32 %v294, %v312
    %v318 = vadd.f32 %v295, %v312
    %v319 = vadd.f32 %v296, %v312
    %v320 = vadd.f32 %v297, %v312
    %v321 = vadd.f32 %v298, %v312
    %v322 = vadd.f32 %v299, %v312
    %v323 = vadd.f32 %v300, %v312
    %v324 = vadd.f32 %v301, %v312
    %v325 = vadd.f32 %v302, %v312
    %v326 = vadd.f32 %v303, %v312
    %v327 = vadd.f32 %v304, %v312
    %v328 = vadd.f32 %v305, %v312
    %v329 = vadd.f32 %v306, %v312
    %v330 = vld [vmem:[%s4] sm:$0xff]
    %v331 = vld [vmem:[%s4 + $0x8] sm:$0xff]
    %v332 = vld [vmem:[%s4 + $0x10] sm:$0xff]
    %v333 = vld [vmem:[%s4 + $0x18] sm:$0xff]
    %v334 = vld [vmem:[%s4 + $0x20] sm:$0xff]
    %v335 = vld [vmem:[%s4 + $0x28] sm:$0xff]
    %v336 = vld [vmem:[%s4 + $0x30] sm:$0xff]
    %v337 = vld [vmem:[%s4 + $0x38] sm:$0xff]
    %v338 = vld [vmem:[%s4 + $0x40] sm:$0xff]
    %v339 = vld [vmem:[%s4 + $0x48] sm:$0xff]
    %v340 = vld [vmem:[%s4 + $0x50] sm:$0xff]
    %v341 = vld [vmem:[%s4 + $0x58] sm:$0xff]
    %v342 = vld [vmem:[%s4 + $0x60] sm:$0xff]
    %v343 = vld [vmem:[%s4 + $0x68] sm:$0xff]
    %v344 = vld [vmem:[%s4 + $0x70] sm:$0xff]
    %v345 = vld [vmem:[%s4 + $0x78] sm:$0xff]
    %v346 = vadd.f32 %v314, %v330
    %v347 = vadd.f32 %v315, %v331
    %v348 = vadd.f32 %v316, %v332
    %v349 = vadd.f32 %v317, %v333
    %v350 = vadd.f32 %v318, %v334
    %v351 = vadd.f32 %v319, %v335
    %v352 = vadd.f32 %v320, %v336
    %v353 = vadd.f32 %v321, %v337
    %v354 = vadd.f32 %v322, %v338
    %v355 = vadd.f32 %v323, %v339
    %v356 = vadd.f32 %v324, %v340
    %v357 = vadd.f32 %v325, %v341
    %v358 = vadd.f32 %v326, %v342
    %v359 = vadd.f32 %v327, %v343
    %v360 = vadd.f32 %v328, %v344
    %v361 = vadd.f32 %v329, %v345
    %v362 = vmax.f32 %v346, 0.0
    %v363 = vmax.f32 %v347, 0.0
    %v364 = vmax.f32 %v348, 0.0
    %v365 = vmax.f32 %v349, 0.0
    %v366 = vmax.f32 %v350, 0.0
    %v367 = vmax.f32 %v351, 0.0
    %v368 = vmax.f32 %v352, 0.0
    %v369 = vmax.f32 %v353, 0.0
    %v370 = vmax.f32 %v354, 0.0
    %v371 = vmax.f32 %v355, 0.0
    %v372 = vmax.f32 %v356, 0.0
    %v373 = vmax.f32 %v357, 0.0
    %v374 = vmax.f32 %v358, 0.0
    %v375 = vmax.f32 %v359, 0.0
    %v376 = vmax.f32 %v360, 0.0
    %v377 = vmax.f32 %v361, 0.0
    %378 = vst [vmem:[%s5] sm:$0xff] %v362
    %379 = vst [vmem:[%s5 + $0x8] sm:$0xff] %v363
    %380 = vst [vmem:[%s5 + $0x10] sm:$0xff] %v364
    %381 = vst [vmem:[%s5 + $0x18] sm:$0xff] %v365
    %382 = vst [vmem:[%s5 + $0x20] sm:$0xff] %v366
    %383 = vst [vmem:[%s5 + $0x28] sm:$0xff] %v367
    %384 = vst [vmem:[%s5 + $0x30] sm:$0xff] %v368
    %385 = vst [vmem:[%s5 + $0x38] sm:$0xff] %v369
    %386 = vst [vmem:[%s5 + $0x40] sm:$0xff] %v370
    %387 = vst [vmem:[%s5 + $0x48] sm:$0xff] %v371
    %388 = vst [vmem:[%s5 + $0x50] sm:$0xff] %v372
    %389 = vst [vmem:[%s5 + $0x58] sm:$0xff] %v373
    %390 = vst [vmem:[%s5 + $0x60] sm:$0xff] %v374
    %391 = vst [vmem:[%s5 + $0x68] sm:$0xff] %v375
    %392 = vst [vmem:[%s5 + $0x70] sm:$0xff] %v376
    %393 = vst [vmem:[%s5 + $0x78] sm:$0xff] %v377
  $region29: #{basic_block_forward.5} parent=0 // pred_fallthru
    _
  // Predicated region
  $region30: #{basic_block_forward.5} parent=0 // pred_check
    _
  $region31: #{basic_block_forward.5} parent=0 // pred_check_branch
    %395 = sbr.rel (0) target = $region33
  $region32: #{basic_block_forward.5} parent=0 // pred_region
    _
  $region33: #{basic_block_forward.5} parent=0 // pred_fallthru
    _
  // Predicated region
  $region34: #{basic_block_forward.5} parent=0 // pred_check
    _
  $region35: #{basic_block_forward.5} parent=0 // pred_check_branch
    %397 = sbr.rel (0) target = $region37
  $region36: #{basic_block_forward.5} parent=0 // pred_region
    _
  $region37: #{basic_block_forward.5} parent=0 // pred_fallthru
    _

</llo_original>
